<compile_context>
chip_gen: v5e
topology: v5e:2x2
jax: 0.10.0
libtpu: 0.0.40
codegen_flags: <defaults>
</compile_context>

<pallas_src>
import jax
import jax.numpy as jnp
from jax import lax
from jax.experimental import pallas as pl
from jax.experimental.pallas import tpu as pltpu


def _round_up(x, m):
    return ((x + m - 1) // m) * m


def _pad2(a, shape):
    """Zero-pad a 2-D array up to `shape` (no-op / no copy if already there)."""
    if tuple(a.shape) == tuple(shape):
        return a
    out = jnp.zeros(shape, a.dtype)
    return out.at[: a.shape[0], : a.shape[1]].set(a)


def _default_vmem_limit_bytes():
    """Per-generation VMEM limit with headroom for Mosaic internal scratch."""
    try:
        cap = int(pltpu.get_tpu_info().vmem_capacity_bytes)
    except Exception:
        cap = 64 * 1024 * 1024  # conservative (v7x physical VMEM)
    headroom = max(cap // 8, 8 * 1024 * 1024)   # v7x: 8 MiB, v5e/v6e: 16 MiB
    return max(cap - headroom, 16 * 1024 * 1024)


def _make_kernel(compute_scores):
    def kernel(x_ref, z_ref, w_ref, b_ref, c_ref, *out_refs):
        f32 = jnp.float32

        x = x_ref[...]            # (tile_n, dxp)  f32 or bf16
        z = z_ref[...]            # (tile_n, dzp)  f32 or bf16
        w = w_ref[...]            # (dxp, dzp)     VMEM-resident across steps
        b = b_ref[...]            # (1, dxp)       f32
        c = c_ref[...]            # (1, dzp)       f32

        x32 = x.astype(f32)
        z32 = z.astype(f32)

        # score_joint_latent = X @ W + c   (MXU, f32 accumulation)
        xw = jnp.dot(x, w, preferred_element_type=f32)        # (tile_n, dzp)
        score_lat = xw + c

        if compute_scores:
            energy_ref, score_obs_ref, score_lat_ref = out_refs
            score_lat_ref[...] = score_lat.astype(score_lat_ref.dtype)
            # score_joint_obs = Z @ W^T + b - x (contract last axes, no W.T)
            zwT = lax.dot_general(z, w,
                                  dimension_numbers=(((1,), (1,)), ((), ())),
                                  preferred_element_type=f32)  # (tile_n, dxp)
            score_obs_ref[...] = (zwT + b - x32).astype(score_obs_ref.dtype)
        else:
            (energy_ref,) = out_refs

        # energy[i] = sum_j z_ij * score_lat_ij + sum_k x_ik * (b_k - 0.5 x_ik)
        # == x^T W z + b^T x + c^T z - 0.5||x||^2 (reuses score_lat).
        # Reduce via ones-row matvecs -> lane-dense (1, tile_n) energy row.
        g_z = z32 * score_lat                                  # (tile_n, dzp)
        g_x = x32 * (b - 0.5 * x32)                            # (tile_n, dxp)
        ones_z = jnp.ones((1, g_z.shape[1]), f32)
        ones_x = jnp.ones((1, g_x.shape[1]), f32)
        e_row = (lax.dot_general(ones_z, g_z, (((1,), (1,)), ((), ())),
                                 preferred_element_type=f32)
                 + lax.dot_general(ones_x, g_x, (((1,), (1,)), ((), ())),
                                   preferred_element_type=f32))  # (1, tile_n)
        energy_ref[...] = e_row.reshape(energy_ref.shape)

    return kernel


def latent_ebm_forward(X, Z, W, b, c, *, compute_scores=True,
                       matmul_dtype=None, max_tile_rows=1024,
                       vmem_limit_bytes=None):
    """Bilinear latent EBM forward (+ optional joint scores).

    Args:
      X: [n, dx], Z: [n, dz], W: [dx, dz], b: [dx], c: [dz]
      compute_scores: if False, only the energy is computed/written (skips the
        Z @ W^T matmul and both score writebacks — the forward()-only path).
      matmul_dtype: None (f32) or jnp.bfloat16 for the MXU operands X/Z/W.
      max_tile_rows: upper cap on the batch tile.
      vmem_limit_bytes: override for the per-chip derived VMEM limit.

    Returns:
      energy [n] f32, and if compute_scores also score_obs [n, dx] and
      score_lat [n, dz], both f32.
    """
    n, dx = X.shape
    n2, dz = Z.shape
    assert n == n2 and W.shape == (dx, dz)
    f32 = jnp.float32

    in_dtype = matmul_dtype if matmul_dtype is not None else jnp.promote_types(
        X.dtype, f32)
    in_itemsize = jnp.dtype(in_dtype).itemsize
    # Sublane minimum: 8 for f32, 16 for bf16 tiles.
    sub = 16 if in_itemsize == 2 else 8

    # Lane-dense feature dims (multiples of 128); zero padding is exact.
    dxp = _round_up(max(dx, 1), 128)
    dzp = _round_up(max(dz, 1), 128)

    # --- VMEM-budget-driven batch tile --------------------------------------
    vmem_limit = (vmem_limit_bytes if vmem_limit_bytes is not None
                  else _default_vmem_limit_bytes())
    # Budget conservatively for a double-buffered W (the Buffered(1) request
    # below is treated as bonus headroom, since it may fall back).
    w_bytes = 2 * dxp * dzp * in_itemsize
    const_bytes = 2 * (dxp + dzp) * 4 + 64 * 1024
    headroom = 2 * 1024 * 1024
    per_row = ((dxp + dzp) * in_itemsize * 2          # double-buffered X/Z tiles
               + (dxp + dzp) * 4 * (2 if compute_scores else 0)  # score out bufs
               + (dxp + dzp) * 4 * 4)                 # f32 temporaries estimate
    budget = vmem_limit - w_bytes - const_bytes - headroom
    max_tile = max(budget // per_row, sub) if budget > 0 else sub
    max_tile = max((min(max_tile, max_tile_rows) // sub) * sub, sub)

    n8 = _round_up(n, sub)
    num_tiles = -(-n8 // max_tile)
    if num_tiles == 1 and n8 >= 2 * sub:
        num_tiles = 2   # give both v7x TensorCores work; negligible cost elsewhere
    tile_n = _round_up(-(-n8 // num_tiles), sub)
    n_pad = tile_n * num_tiles
    num_tiles = n_pad // tile_n

    # --- Padded / cast operands (no-op copies when already aligned) ----------
    Xp = _pad2(X.astype(in_dtype), (n_pad, dxp))
    Zp = _pad2(Z.astype(in_dtype), (n_pad, dzp))
    Wp = _pad2(W.astype(in_dtype), (dxp, dzp))
    bp = _pad2(b.reshape(1, dx).astype(f32), (1, dxp))
    cp = _pad2(c.reshape(1, dz).astype(f32), (1, dzp))

    kernel = _make_kernel(compute_scores)

    out_shapes = [jax.ShapeDtypeStruct((num_tiles, 1, tile_n), f32)]  # energy rows
    out_specs = [pl.BlockSpec((1, 1, tile_n), lambda i: (i, 0, 0))]
    if compute_scores:
        out_shapes += [jax.ShapeDtypeStruct((n_pad, dxp), f32),
                       jax.ShapeDtypeStruct((n_pad, dzp), f32)]
        out_specs += [pl.BlockSpec((tile_n, dxp), lambda i: (i, 0)),
                      pl.BlockSpec((tile_n, dzp), lambda i: (i, 0))]

    def _const_spec(shape, single_buffer):
        index_map = lambda i: (0,) * len(shape)
        if single_buffer:
            try:
                # W/b/c never change block index: a single VMEM buffer suffices.
                return pl.BlockSpec(shape, index_map,
                                    pipeline_mode=pl.Buffered(1))
            except TypeError:
                return pl.BlockSpec(shape, index_map)
        return pl.BlockSpec(shape, index_map)

    def _run(single_buffer_consts):
        in_specs = [
            pl.BlockSpec((tile_n, dxp), lambda i: (i, 0)),           # X tile
            pl.BlockSpec((tile_n, dzp), lambda i: (i, 0)),           # Z tile
            _const_spec((dxp, dzp), single_buffer_consts),           # W resident
            _const_spec((1, dxp), single_buffer_consts),             # b resident
            _const_spec((1, dzp), single_buffer_consts),             # c resident
        ]
        return pl.pallas_call(
            kernel,
            out_shape=tuple(out_shapes),
            grid=(num_tiles,),
            in_specs=in_specs,
            out_specs=tuple(out_specs),
            compiler_params=pltpu.CompilerParams(
                dimension_semantics=("parallel",),
                vmem_limit_bytes=int(vmem_limit),
            ),
        )(Xp, Zp, Wp, bp, cp)

    try:
        outs = _run(True)
    except Exception:
        # Fallback: default double-buffered resident operands.
        outs = _run(False)

    energy = outs[0].reshape(n_pad)[:n]
    if not compute_scores:
        return energy
    score_obs = outs[1][:n, :dx]
    score_lat = outs[2][:n, :dz]
    return energy, score_obs, score_lat


if __name__ == "__main__":
    key = jax.random.PRNGKey(0)
    # Small, deliberately non-aligned shapes to exercise padding + multi-tile grid.
    n, dx, dz = 24, 20, 36

    kx, kz, kw, kb, kc = jax.random.split(key, 5)
    X = jax.random.normal(kx, (n, dx), dtype=jnp.float32)
    Z = jax.random.normal(kz, (n, dz), dtype=jnp.float32)
    # The abstract module defines no weights; the concrete bilinear EBM uses
    # W[dx,dz], b[dx], c[dz].
    W = 0.1 * jax.random.normal(kw, (dx, dz), dtype=jnp.float32)
    b = 0.1 * jax.random.normal(kb, (dx,), dtype=jnp.float32)
    c = 0.1 * jax.random.normal(kc, (dz,), dtype=jnp.float32)

    # Pure-JAX reference of the forward semantics.
    energy_ref = (jnp.sum((X @ W) * Z, axis=-1)
                  + X @ b + Z @ c - 0.5 * jnp.sum(X * X, axis=-1))
    score_obs_ref = Z @ W.T + b - X
    score_lat_ref = X @ W + c

    # 1) Full path: energy + both joint scores (f32).
    energy, score_obs, score_lat = latent_ebm_forward(X, Z, W, b, c)
    jax.block_until_ready((energy, score_obs, score_lat))
    assert energy.shape == (n,)
    assert score_obs.shape == (n, dx)
    assert score_lat.shape == (n, dz)
    assert jnp.allclose(energy, energy_ref, atol=1e-3, rtol=1e-3)
    assert jnp.allclose(score_obs, score_obs_ref, atol=1e-3, rtol=1e-3)
    assert jnp.allclose(score_lat, score_lat_ref, atol=1e-3, rtol=1e-3)

    # 2) Energy-only path (forward() only): no score writebacks, no Z@W^T.
    energy_only = latent_ebm_forward(X, Z, W, b, c, compute_scores=False)
    jax.block_until_ready(energy_only)
    assert energy_only.shape == (n,)
    assert jnp.allclose(energy_only, energy_ref, atol=1e-3, rtol=1e-3)

    # 3) Optional bf16 matmul path (native MXU dtype on v6e/v7x); loose tolerance.
    e_bf, so_bf, sl_bf = latent_ebm_forward(
        X, Z, W, b, c, matmul_dtype=jnp.bfloat16)
    jax.block_until_ready((e_bf, so_bf, sl_bf))
    assert jnp.allclose(e_bf, energy_ref, atol=0.5, rtol=5e-2)
    assert jnp.allclose(so_bf, score_obs_ref, atol=0.1, rtol=5e-2)
    assert jnp.allclose(sl_bf, score_lat_ref, atol=0.1, rtol=5e-2)

    print("KERNEL_OK")
</pallas_src>

<mosaic_0001>
module attributes {stable_mosaic.version = 11 : i64} {
  func.func @kernel(%arg0: i32, %arg1: memref<16x128xf32, #tpu.memory_space<vmem>>, %arg2: memref<16x128xf32, #tpu.memory_space<vmem>>, %arg3: memref<128x128xf32, #tpu.memory_space<vmem>>, %arg4: memref<1x128xf32, #tpu.memory_space<vmem>>, %arg5: memref<1x128xf32, #tpu.memory_space<vmem>>, %arg6: memref<1x1x16xf32, #tpu.memory_space<vmem>>, %arg7: memref<16x128xf32, #tpu.memory_space<vmem>>, %arg8: memref<16x128xf32, #tpu.memory_space<vmem>>) attributes {dimension_semantics = [#tpu.dimension_semantics<parallel>], iteration_bounds = array<i64: 2>, scalar_prefetch = 0 : i64, scratch_operands = 0 : i64, tpu.core_type = #tpu.core_type<tc>, window_params = [{transform_indices = @transform_0, window_bounds = array<i64: 16, 128>}, {transform_indices = @transform_1, window_bounds = array<i64: 16, 128>}, {pipeline_mode = #tpu.pipeline_mode<synchronous>, transform_indices = @transform_2, window_bounds = array<i64: 128, 128>}, {pipeline_mode = #tpu.pipeline_mode<synchronous>, transform_indices = @transform_3, window_bounds = array<i64: 1, 128>}, {pipeline_mode = #tpu.pipeline_mode<synchronous>, transform_indices = @transform_4, window_bounds = array<i64: 1, 128>}, {transform_indices = @transform_5, window_bounds = array<i64: 1, 1, 16>}, {transform_indices = @transform_6, window_bounds = array<i64: 16, 128>}, {transform_indices = @transform_7, window_bounds = array<i64: 16, 128>}]} {
    %c0 = arith.constant 0 : index
    %c0_0 = arith.constant 0 : index
    %0 = vector.load %arg1[%c0, %c0_0] : memref<16x128xf32, #tpu.memory_space<vmem>>, vector<16x128xf32>
    %c0_1 = arith.constant 0 : index
    %c0_2 = arith.constant 0 : index
    %1 = vector.load %arg2[%c0_1, %c0_2] : memref<16x128xf32, #tpu.memory_space<vmem>>, vector<16x128xf32>
    %c0_3 = arith.constant 0 : index
    %c0_4 = arith.constant 0 : index
    %2 = vector.load %arg3[%c0_3, %c0_4] : memref<128x128xf32, #tpu.memory_space<vmem>>, vector<128x128xf32>
    %c0_5 = arith.constant 0 : index
    %c0_6 = arith.constant 0 : index
    %3 = vector.load %arg4[%c0_5, %c0_6] : memref<1x128xf32, #tpu.memory_space<vmem>>, vector<1x128xf32>
    %c0_7 = arith.constant 0 : index
    %c0_8 = arith.constant 0 : index
    %4 = vector.load %arg5[%c0_7, %c0_8] : memref<1x128xf32, #tpu.memory_space<vmem>>, vector<1x128xf32>
    %cst = arith.constant dense<0.000000e+00> : vector<16x128xf32>
    %5 = tpu.matmul %0, %2, %cst {dimension_numbers = #tpu.dot_dimension_numbers<[1], [0], [0], [1], [0, 0, 1, 1], [], []>} : vector<16x128xf32>, vector<128x128xf32>, vector<16x128xf32> -> vector<16x128xf32>
    %6 = vector.broadcast %4 : vector<1x128xf32> to vector<16x128xf32>
    %7 = arith.addf %5, %6 : vector<16x128xf32>
    %c0_9 = arith.constant 0 : index
    %c0_10 = arith.constant 0 : index
    %8 = vector.load %arg8[%c0_9, %c0_10] : memref<16x128xf32, #tpu.memory_space<vmem>>, vector<16x128xf32>
    tpu.vector_store %arg8[%c0_9, %c0_10], %7 {strides = array<i32>} : memref<16x128xf32, #tpu.memory_space<vmem>>, vector<16x128xf32>,
    %cst_11 = arith.constant dense<0.000000e+00> : vector<16x128xf32>
    %9 = tpu.matmul %1, %2, %cst_11 {dimension_numbers = #tpu.dot_dimension_numbers<[1], [1], [0], [0], [0, 0, 1, 0], [], []>} : vector<16x128xf32>, vector<128x128xf32>, vector<16x128xf32> -> vector<16x128xf32>
    %10 = vector.broadcast %3 : vector<1x128xf32> to vector<16x128xf32>
    %11 = arith.addf %9, %10 : vector<16x128xf32>
    %12 = arith.subf %11, %0 : vector<16x128xf32>
    %c0_12 = arith.constant 0 : index
    %c0_13 = arith.constant 0 : index
    %13 = vector.load %arg7[%c0_12, %c0_13] : memref<16x128xf32, #tpu.memory_space<vmem>>, vector<16x128xf32>
    tpu.vector_store %arg7[%c0_12, %c0_13], %12 {strides = array<i32>} : memref<16x128xf32, #tpu.memory_space<vmem>>, vector<16x128xf32>,
    %14 = arith.mulf %1, %7 : vector<16x128xf32>
    %cst_14 = arith.constant 5.000000e-01 : f32
    %15 = vector.broadcast %cst_14 : f32 to vector<16x128xf32>
    %16 = arith.mulf %15, %0 : vector<16x128xf32>
    %17 = vector.broadcast %3 : vector<1x128xf32> to vector<16x128xf32>
    %18 = arith.subf %17, %16 : vector<16x128xf32>
    %19 = arith.mulf %0, %18 : vector<16x128xf32>
    %cst_15 = arith.constant 1.000000e+00 : f32
    %20 = vector.broadcast %cst_15 : f32 to vector<1x128xf32>
    %cst_16 = arith.constant 1.000000e+00 : f32
    %21 = vector.broadcast %cst_16 : f32 to vector<1x128xf32>
    %cst_17 = arith.constant dense<0.000000e+00> : vector<1x16xf32>
    %22 = tpu.matmul %20, %14, %cst_17 {dimension_numbers = #tpu.dot_dimension_numbers<[1], [1], [0], [0], [0, 0, 1, 0], [], []>} : vector<1x128xf32>, vector<16x128xf32>, vector<1x16xf32> -> vector<1x16xf32>
    %cst_18 = arith.constant dense<0.000000e+00> : vector<1x16xf32>
    %23 = tpu.matmul %21, %19, %cst_18 {dimension_numbers = #tpu.dot_dimension_numbers<[1], [1], [0], [0], [0, 0, 1, 0], [], []>} : vector<1x128xf32>, vector<16x128xf32>, vector<1x16xf32> -> vector<1x16xf32>
    %24 = arith.addf %22, %23 : vector<1x16xf32>
    %25 = vector.shape_cast %24 : vector<1x16xf32> to vector<1x1x16xf32>
    %c0_19 = arith.constant 0 : index
    %c0_20 = arith.constant 0 : index
    %c0_21 = arith.constant 0 : index
    %26 = vector.load %arg6[%c0_19, %c0_20, %c0_21] : memref<1x1x16xf32, #tpu.memory_space<vmem>>, vector<1x1x16xf32>
    tpu.vector_store %arg6[%c0_19, %c0_20, %c0_21], %25 {strides = array<i32>} : memref<1x1x16xf32, #tpu.memory_space<vmem>>, vector<1x1x16xf32>,
    return
  }
  func.func @transform_0(%arg0: i32) -> (i32, i32) {
    %c0_i32 = arith.constant 0 : i32
    %c0_i32_0 = arith.constant 0 : i32
    return %arg0, %c0_i32 : i32, i32
  }
  func.func @transform_1(%arg0: i32) -> (i32, i32) {
    %c0_i32 = arith.constant 0 : i32
    %c0_i32_0 = arith.constant 0 : i32
    return %arg0, %c0_i32 : i32, i32
  }
  func.func @transform_2(%arg0: i32) -> (i32, i32) {
    %c0_i32 = arith.constant 0 : i32
    %c0_i32_0 = arith.constant 0 : i32
    %c0_i32_1 = arith.constant 0 : i32
    return %c0_i32, %c0_i32_0 : i32, i32
  }
  func.func @transform_3(%arg0: i32) -> (i32, i32) {
    %c0_i32 = arith.constant 0 : i32
    %c0_i32_0 = arith.constant 0 : i32
    %c0_i32_1 = arith.constant 0 : i32
    return %c0_i32, %c0_i32_0 : i32, i32
  }
  func.func @transform_4(%arg0: i32) -> (i32, i32) {
    %c0_i32 = arith.constant 0 : i32
    %c0_i32_0 = arith.constant 0 : i32
    %c0_i32_1 = arith.constant 0 : i32
    return %c0_i32, %c0_i32_0 : i32, i32
  }
  func.func @transform_5(%arg0: i32) -> (i32, i32, i32) {
    %c0_i32 = arith.constant 0 : i32
    %c0_i32_0 = arith.constant 0 : i32
    %c0_i32_1 = arith.constant 0 : i32
    return %arg0, %c0_i32, %c0_i32_0 : i32, i32, i32
  }
  func.func @transform_6(%arg0: i32) -> (i32, i32) {
    %c0_i32 = arith.constant 0 : i32
    %c0_i32_0 = arith.constant 0 : i32
    return %arg0, %c0_i32 : i32, i32
  }
  func.func @transform_7(%arg0: i32) -> (i32, i32) {
    %c0_i32 = arith.constant 0 : i32
    %c0_i32_0 = arith.constant 0 : i32
    return %arg0, %c0_i32 : i32, i32
  }
}

module attributes {stable_mosaic.version = 11 : i64} {
  func.func @kernel(%arg0: i32, %arg1: memref<16x128xf32, #tpu.memory_space<vmem>>, %arg2: memref<16x128xf32, #tpu.memory_space<vmem>>, %arg3: memref<128x128xf32, #tpu.memory_space<vmem>>, %arg4: memref<1x128xf32, #tpu.memory_space<vmem>>, %arg5: memref<1x128xf32, #tpu.memory_space<vmem>>, %arg6: memref<1x1x16xf32, #tpu.memory_space<vmem>>, %arg7: memref<16x128xf32, #tpu.memory_space<vmem>>, %arg8: memref<16x128xf32, #tpu.memory_space<vmem>>) attributes {dimension_semantics = [#tpu.dimension_semantics<parallel>], iteration_bounds = array<i64: 2>, scalar_prefetch = 0 : i64, scratch_operands = 0 : i64, tpu.core_type = #tpu.core_type<tc>, window_params = [{transform_indices = @transform_0, window_bounds = array<i64: 16, 128>}, {transform_indices = @transform_1, window_bounds = array<i64: 16, 128>}, {pipeline_mode = #tpu.pipeline_mode<synchronous>, transform_indices = @transform_2, window_bounds = array<i64: 128, 128>}, {pipeline_mode = #tpu.pipeline_mode<synchronous>, transform_indices = @transform_3, window_bounds = array<i64: 1, 128>}, {pipeline_mode = #tpu.pipeline_mode<synchronous>, transform_indices = @transform_4, window_bounds = array<i64: 1, 128>}, {transform_indices = @transform_5, window_bounds = array<i64: 1, 1, 16>}, {transform_indices = @transform_6, window_bounds = array<i64: 16, 128>}, {transform_indices = @transform_7, window_bounds = array<i64: 16, 128>}]} {
    %c0 = arith.constant 0 : index
    %c0_0 = arith.constant 0 : index
    %0 = vector.load %arg1[%c0, %c0_0] : memref<16x128xf32, #tpu.memory_space<vmem>>, vector<16x128xf32>
    %c0_1 = arith.constant 0 : index
    %c0_2 = arith.constant 0 : index
    %1 = vector.load %arg2[%c0_1, %c0_2] : memref<16x128xf32, #tpu.memory_space<vmem>>, vector<16x128xf32>
    %c0_3 = arith.constant 0 : index
    %c0_4 = arith.constant 0 : index
    %2 = vector.load %arg3[%c0_3, %c0_4] : memref<128x128xf32, #tpu.memory_space<vmem>>, vector<128x128xf32>
    %c0_5 = arith.constant 0 : index
    %c0_6 = arith.constant 0 : index
    %3 = vector.load %arg4[%c0_5, %c0_6] : memref<1x128xf32, #tpu.memory_space<vmem>>, vector<1x128xf32>
    %c0_7 = arith.constant 0 : index
    %c0_8 = arith.constant 0 : index
    %4 = vector.load %arg5[%c0_7, %c0_8] : memref<1x128xf32, #tpu.memory_space<vmem>>, vector<1x128xf32>
    %cst = arith.constant dense<0.000000e+00> : vector<16x128xf32>
    %5 = tpu.matmul %0, %2, %cst {dimension_numbers = #tpu.dot_dimension_numbers<[1], [0], [0], [1], [0, 0, 1, 1], [], []>} : vector<16x128xf32>, vector<128x128xf32>, vector<16x128xf32> -> vector<16x128xf32>
    %6 = vector.broadcast %4 : vector<1x128xf32> to vector<16x128xf32>
    %7 = arith.addf %5, %6 : vector<16x128xf32>
    %c0_9 = arith.constant 0 : index
    %c0_10 = arith.constant 0 : index
    %8 = vector.load %arg8[%c0_9, %c0_10] : memref<16x128xf32, #tpu.memory_space<vmem>>, vector<16x128xf32>
    tpu.vector_store %arg8[%c0_9, %c0_10], %7 {strides = array<i32>} : memref<16x128xf32, #tpu.memory_space<vmem>>, vector<16x128xf32>,
    %cst_11 = arith.constant dense<0.000000e+00> : vector<16x128xf32>
    %9 = tpu.matmul %1, %2, %cst_11 {dimension_numbers = #tpu.dot_dimension_numbers<[1], [1], [0], [0], [0, 0, 1, 0], [], []>} : vector<16x128xf32>, vector<128x128xf32>, vector<16x128xf32> -> vector<16x128xf32>
    %10 = vector.broadcast %3 : vector<1x128xf32> to vector<16x128xf32>
    %11 = arith.addf %9, %10 : vector<16x128xf32>
    %12 = arith.subf %11, %0 : vector<16x128xf32>
    %c0_12 = arith.constant 0 : index
    %c0_13 = arith.constant 0 : index
    %13 = vector.load %arg7[%c0_12, %c0_13] : memref<16x128xf32, #tpu.memory_space<vmem>>, vector<16x128xf32>
    tpu.vector_store %arg7[%c0_12, %c0_13], %12 {strides = array<i32>} : memref<16x128xf32, #tpu.memory_space<vmem>>, vector<16x128xf32>,
    %14 = arith.mulf %1, %7 : vector<16x128xf32>
    %cst_14 = arith.constant 5.000000e-01 : f32
    %15 = vector.broadcast %cst_14 : f32 to vector<16x128xf32>
    %16 = arith.mulf %15, %0 : vector<16x128xf32>
    %17 = vector.broadcast %3 : vector<1x128xf32> to vector<16x128xf32>
    %18 = arith.subf %17, %16 : vector<16x128xf32>
    %19 = arith.mulf %0, %18 : vector<16x128xf32>
    %cst_15 = arith.constant 1.000000e+00 : f32
    %20 = vector.broadcast %cst_15 : f32 to vector<1x128xf32>
    %cst_16 = arith.constant 1.000000e+00 : f32
    %21 = vector.broadcast %cst_16 : f32 to vector<1x128xf32>
    %cst_17 = arith.constant dense<0.000000e+00> : vector<1x16xf32>
    %22 = tpu.matmul %20, %14, %cst_17 {dimension_numbers = #tpu.dot_dimension_numbers<[1], [1], [0], [0], [0, 0, 1, 0], [], []>} : vector<1x128xf32>, vector<16x128xf32>, vector<1x16xf32> -> vector<1x16xf32>
    %cst_18 = arith.constant dense<0.000000e+00> : vector<1x16xf32>
    %23 = tpu.matmul %21, %19, %cst_18 {dimension_numbers = #tpu.dot_dimension_numbers<[1], [1], [0], [0], [0, 0, 1, 0], [], []>} : vector<1x128xf32>, vector<16x128xf32>, vector<1x16xf32> -> vector<1x16xf32>
    %24 = arith.addf %22, %23 : vector<1x16xf32>
    %25 = vector.shape_cast %24 : vector<1x16xf32> to vector<1x1x16xf32>
    %c0_19 = arith.constant 0 : index
    %c0_20 = arith.constant 0 : index
    %c0_21 = arith.constant 0 : index
    %26 = vector.load %arg6[%c0_19, %c0_20, %c0_21] : memref<1x1x16xf32, #tpu.memory_space<vmem>>, vector<1x1x16xf32>
    tpu.vector_store %arg6[%c0_19, %c0_20, %c0_21], %25 {strides = array<i32>} : memref<1x1x16xf32, #tpu.memory_space<vmem>>, vector<1x1x16xf32>,
    return
  }
  func.func @transform_0(%arg0: i32) -> (i32, i32) {
    %c0_i32 = arith.constant 0 : i32
    %c0_i32_0 = arith.constant 0 : i32
    return %arg0, %c0_i32 : i32, i32
  }
  func.func @transform_1(%arg0: i32) -> (i32, i32) {
    %c0_i32 = arith.constant 0 : i32
    %c0_i32_0 = arith.constant 0 : i32
    return %arg0, %c0_i32 : i32, i32
  }
  func.func @transform_2(%arg0: i32) -> (i32, i32) {
    %c0_i32 = arith.constant 0 : i32
    %c0_i32_0 = arith.constant 0 : i32
    %c0_i32_1 = arith.constant 0 : i32
    return %c0_i32, %c0_i32_0 : i32, i32
  }
  func.func @transform_3(%arg0: i32) -> (i32, i32) {
    %c0_i32 = arith.constant 0 : i32
    %c0_i32_0 = arith.constant 0 : i32
    %c0_i32_1 = arith.constant 0 : i32
    return %c0_i32, %c0_i32_0 : i32, i32
  }
  func.func @transform_4(%arg0: i32) -> (i32, i32) {
    %c0_i32 = arith.constant 0 : i32
    %c0_i32_0 = arith.constant 0 : i32
    %c0_i32_1 = arith.constant 0 : i32
    return %c0_i32, %c0_i32_0 : i32, i32
  }
  func.func @transform_5(%arg0: i32) -> (i32, i32, i32) {
    %c0_i32 = arith.constant 0 : i32
    %c0_i32_0 = arith.constant 0 : i32
    %c0_i32_1 = arith.constant 0 : i32
    return %arg0, %c0_i32, %c0_i32_0 : i32, i32, i32
  }
  func.func @transform_6(%arg0: i32) -> (i32, i32) {
    %c0_i32 = arith.constant 0 : i32
    %c0_i32_0 = arith.constant 0 : i32
    return %arg0, %c0_i32 : i32, i32
  }
  func.func @transform_7(%arg0: i32) -> (i32, i32) {
    %c0_i32 = arith.constant 0 : i32
    %c0_i32_0 = arith.constant 0 : i32
    return %arg0, %c0_i32 : i32, i32
  }
}

</mosaic_0001>

<llo_original>
// kernel: tpu_custom_call.1
$region0: #{tpu_custom_call.1}
  #allocation0 [shape = 'u32[]', space=smem, size = 0x4, offset = 0x4, fixed_abs, tag = 'smem constant byte address 0x4 - core index']
  #allocation1 [shape = 'u32[72,128]{1,0:T(1,128)}', space=vmem, size = 0x9000, scoped, tag = 'internal scratch']
  %s0 = inlined_call_operand.hbm [shape: f32[32,128], index: 0, kind: input, shape index: {}]
  %s1 = inlined_call_operand.hbm [shape: f32[32,128], index: 1, kind: input, shape index: {}]
  %s2 = inlined_call_operand.hbm [shape: f32[128,128], index: 2, kind: input, shape index: {}]
  %s3 = inlined_call_operand.vmem [shape: f32[1,128], index: 3, kind: input, shape index: {}]
  %s4 = inlined_call_operand.vmem [shape: f32[1,128], index: 4, kind: input, shape index: {}]
  %s5 = inlined_call_operand.hbm [shape: f32[2,1,16], index: 5, kind: output, shape index: {0}]
  %s6 = inlined_call_operand.hbm [shape: f32[32,128], index: 6, kind: output, shape index: {1}]
  %s7 = inlined_call_operand.hbm [shape: f32[32,128], index: 7, kind: output, shape index: {2}]
  %8 = xla_tuple %s5, %s6, %s7
  %s9 = sld [smem:[#allocation0]]
  $region81: #{tpu_custom_call.1} parent=0
    _
  %s11 = ssub.s32 1, %s9
  %s12 = scalar_select 0, %s11, %s9
  $region1: #{tpu_custom_call.1} parent=0
    #allocation2 [shape = 'u8[16384]{0}', space=vmem, size = 0x4000, scoped, tag = 'input window, operand 0']
    #allocation3 [shape = 's32[2]{0}', space=sflag, size = 0x8, scoped, tag = 'scoped memory for tpu_custom_call.1']
    #allocation4 [shape = 's32[2]{0}', space=sflag, size = 0x8, scoped, tag = 'scoped memory for tpu_custom_call.1']
    #allocation5 [shape = 'u8[16384]{0}', space=vmem, size = 0x4000, scoped, tag = 'input window, operand 1']
    #allocation6 [shape = 's32[2]{0}', space=sflag, size = 0x8, scoped, tag = 'scoped memory for tpu_custom_call.1']
    #allocation7 [shape = 'u8[65536]{0}', space=vmem, size = 0x10000, scoped, tag = 'input window, operand 2, single buffered']
    #allocation8 [shape = 'u8[1024]{0}', space=vmem, size = 0x400, scoped, tag = 'output window, operand 0']
    #allocation9 [shape = 'u8[16384]{0}', space=vmem, size = 0x4000, scoped, tag = 'output window, operand 1']
    #allocation10 [shape = 's32[2]{0}', space=sflag, size = 0x8, scoped, tag = 'scoped memory for tpu_custom_call.1']
    #allocation11 [shape = 'u8[16384]{0}', space=vmem, size = 0x4000, scoped, tag = 'output window, operand 2']
    %13 = vsyncpa [#allocation3], 0
    %s14 = scalar_lea.sflag [#allocation3], 1
    %15 = vsyncpa %s14, 0
    %16 = vsyncpa [#allocation6], 0
    %s17 = scalar_lea.sflag [#allocation6], 1
    %18 = vsyncpa %s17, 0
    %19 = vsyncpa [#allocation4], 0
    %s20 = scalar_lea.sflag [#allocation4], 1
    %21 = vsyncpa %s20, 0
    %22 = vsyncpa [#allocation10], 0
    %s23 = scalar_lea.sflag [#allocation10], 1
    %24 = vsyncpa %s23, 0
    loop: start=0, step=1, limit=4
    $region2: #{tpu_custom_call.1} parent=1 // loop_pre_header
      _
    $region3: #{tpu_custom_call.1} parent=1 // loop_header
      %s26 = sphi 0, %s30
      %p27 = scmp.ge.s32.totalorder %s26, 4
      %s36 = sphi 0, %s38
      %s39 = sphi 0, %s36
      %s40 = sphi 0, %s39
      %s56 = sphi 0, %s40
      %s62 = sphi 0, %s64
      %s65 = sphi 0, %s62
      %s66 = sphi 0, %s65
      %s82 = sphi 0, %s66
      %s86 = sphi 0, %s86
      %s88 = sphi 0, %s86
      %s89 = sphi 0, %s88
      %s103 = sphi 0, %s89
      %s107 = sphi 0, %s107
      %s109 = sphi 0, %s107
      %s110 = sphi 0, %s109
      %s124 = sphi 0, %s110
      %s128 = sphi 0, %s128
      %s130 = sphi 0, %s128
      %s131 = sphi 0, %s130
      %s145 = sphi 0, %s131
      %s151 = sphi 0, %s153
      %s154 = sphi 0, %s151
      %s155 = sphi 0, %s154
      %s171 = sphi 0, %s155
      %s177 = sphi 0, %s179
      %s180 = sphi 0, %s177
      %s181 = sphi 0, %s180
      %s197 = sphi 0, %s181
      %s203 = sphi 0, %s205
      %s206 = sphi 0, %s203
      %s207 = sphi 0, %s206
      %s223 = sphi 0, %s207
    $region4: #{tpu_custom_call.1} parent=1 // loop_header_branch
      %29 = sbr.rel (%p27) target = $region8
    $region5: #{tpu_custom_call.1} parent=1 // loop_body
      %s31 = ssub.s32 %s26, 1
      %s32 = ssub.s32 %s26, 2
      %s33 = sadd.s32 %s26, 1
      %s34 = ssub.s32 %s26, %s33
      %p35 = scmp.eq.s32.totalorder %s34, 0
      %s37 = sadd.s32 %s36, 1
      %s38 = scalar_select %p35, %s36, %s37
      %p41 = pneg %p35
      %p42 = scmp.eq.s32.totalorder %s26, 1
      %p43 = por %p41, %p42
      %p44 = scmp.ne.s32.totalorder %s36, %s39
      %p45 = scmp.eq.s32.totalorder %s26, 0
      %p46 = por %p44, %p45
      %p47 = scmp.ne.s32.totalorder %s36, %s39
      %p48 = scmp.eq.s32.totalorder %s31, 1
      %p49 = por %p47, %p48
      %p50 = scmp.ne.s32.totalorder %s39, %s40
      %p51 = scmp.eq.s32.totalorder %s31, 0
      %p52 = por %p50, %p51
      %p53 = scmp.ne.s32.totalorder %s39, %s40
      %p54 = scmp.eq.s32.totalorder %s32, 1
      %p55 = por %p53, %p54
      %p57 = scmp.ne.s32.totalorder %s40, %s56
      %p58 = scmp.eq.s32.totalorder %s32, 0
      %p59 = por %p57, %p58
      %s60 = ssub.s32 %s26, %s33
      %p61 = scmp.eq.s32.totalorder %s60, 0
      %s63 = sadd.s32 %s62, 1
      %s64 = scalar_select %p61, %s62, %s63
      %p67 = pneg %p61
      %p68 = scmp.eq.s32.totalorder %s26, 1
      %p69 = por %p67, %p68
      %p70 = scmp.ne.s32.totalorder %s62, %s65
      %p71 = scmp.eq.s32.totalorder %s26, 0
      %p72 = por %p70, %p71
      %p73 = scmp.ne.s32.totalorder %s62, %s65
      %p74 = scmp.eq.s32.totalorder %s31, 1
      %p75 = por %p73, %p74
      %p76 = scmp.ne.s32.totalorder %s65, %s66
      %p77 = scmp.eq.s32.totalorder %s31, 0
      %p78 = por %p76, %p77
      %p79 = scmp.ne.s32.totalorder %s65, %s66
      %p80 = scmp.eq.s32.totalorder %s32, 1
      %p81 = por %p79, %p80
      %p83 = scmp.ne.s32.totalorder %s66, %s82
      %p84 = scmp.eq.s32.totalorder %s32, 0
      %p85 = por %p83, %p84
      %s87 = sadd.s32 %s86, 1
      %p90 = scmp.eq.s32.totalorder %s26, 1
      %p91 = scmp.ne.s32.totalorder %s86, %s88
      %p92 = scmp.eq.s32.totalorder %s26, 0
      %p93 = por %p91, %p92
      %p94 = scmp.ne.s32.totalorder %s86, %s88
      %p95 = scmp.eq.s32.totalorder %s31, 1
      %p96 = por %p94, %p95
      %p97 = scmp.ne.s32.totalorder %s88, %s89
      %p98 = scmp.eq.s32.totalorder %s31, 0
      %p99 = por %p97, %p98
      %p100 = scmp.ne.s32.totalorder %s88, %s89
      %p101 = scmp.eq.s32.totalorder %s32, 1
      %p102 = por %p100, %p101
      %p104 = scmp.ne.s32.totalorder %s89, %s103
      %p105 = scmp.eq.s32.totalorder %s32, 0
      %p106 = por %p104, %p105
      %s108 = sadd.s32 %s107, 1
      %p111 = scmp.eq.s32.totalorder %s26, 1
      %p112 = scmp.ne.s32.totalorder %s107, %s109
      %p113 = scmp.eq.s32.totalorder %s26, 0
      %p114 = por %p112, %p113
      %p115 = scmp.ne.s32.totalorder %s107, %s109
      %p116 = scmp.eq.s32.totalorder %s31, 1
      %p117 = por %p115, %p116
      %p118 = scmp.ne.s32.totalorder %s109, %s110
      %p119 = scmp.eq.s32.totalorder %s31, 0
      %p120 = por %p118, %p119
      %p121 = scmp.ne.s32.totalorder %s109, %s110
      %p122 = scmp.eq.s32.totalorder %s32, 1
      %p123 = por %p121, %p122
      %p125 = scmp.ne.s32.totalorder %s110, %s124
      %p126 = scmp.eq.s32.totalorder %s32, 0
      %p127 = por %p125, %p126
      %s129 = sadd.s32 %s128, 1
      %p132 = scmp.eq.s32.totalorder %s26, 1
      %p133 = scmp.ne.s32.totalorder %s128, %s130
      %p134 = scmp.eq.s32.totalorder %s26, 0
      %p135 = por %p133, %p134
      %p136 = scmp.ne.s32.totalorder %s128, %s130
      %p137 = scmp.eq.s32.totalorder %s31, 1
      %p138 = por %p136, %p137
      %p139 = scmp.ne.s32.totalorder %s130, %s131
      %p140 = scmp.eq.s32.totalorder %s31, 0
      %p141 = por %p139, %p140
      %p142 = scmp.ne.s32.totalorder %s130, %s131
      %p143 = scmp.eq.s32.totalorder %s32, 1
      %p144 = por %p142, %p143
      %p146 = scmp.ne.s32.totalorder %s131, %s145
      %p147 = scmp.eq.s32.totalorder %s32, 0
      %p148 = por %p146, %p147
      %s149 = ssub.s32 %s26, %s33
      %p150 = scmp.eq.s32.totalorder %s149, 0
      %s152 = sadd.s32 %s151, 1
      %s153 = scalar_select %p150, %s151, %s152
      %p156 = pneg %p150
      %p157 = scmp.eq.s32.totalorder %s26, 1
      %p158 = por %p156, %p157
      %p159 = scmp.ne.s32.totalorder %s151, %s154
      %p160 = scmp.eq.s32.totalorder %s26, 0
      %p161 = por %p159, %p160
      %p162 = scmp.ne.s32.totalorder %s151, %s154
      %p163 = scmp.eq.s32.totalorder %s31, 1
      %p164 = por %p162, %p163
      %p165 = scmp.ne.s32.totalorder %s154, %s155
      %p166 = scmp.eq.s32.totalorder %s31, 0
      %p167 = por %p165, %p166
      %p168 = scmp.ne.s32.totalorder %s154, %s155
      %p169 = scmp.eq.s32.totalorder %s32, 1
      %p170 = por %p168, %p169
      %p172 = scmp.ne.s32.totalorder %s155, %s171
      %p173 = scmp.eq.s32.totalorder %s32, 0
      %p174 = por %p172, %p173
      %s175 = ssub.s32 %s26, %s33
      %p176 = scmp.eq.s32.totalorder %s175, 0
      %s178 = sadd.s32 %s177, 1
      %s179 = scalar_select %p176, %s177, %s178
      %p182 = pneg %p176
      %p183 = scmp.eq.s32.totalorder %s26, 1
      %p184 = por %p182, %p183
      %p185 = scmp.ne.s32.totalorder %s177, %s180
      %p186 = scmp.eq.s32.totalorder %s26, 0
      %p187 = por %p185, %p186
      %p188 = scmp.ne.s32.totalorder %s177, %s180
      %p189 = scmp.eq.s32.totalorder %s31, 1
      %p190 = por %p188, %p189
      %p191 = scmp.ne.s32.totalorder %s180, %s181
      %p192 = scmp.eq.s32.totalorder %s31, 0
      %p193 = por %p191, %p192
      %p194 = scmp.ne.s32.totalorder %s180, %s181
      %p195 = scmp.eq.s32.totalorder %s32, 1
      %p196 = por %p194, %p195
      %p198 = scmp.ne.s32.totalorder %s181, %s197
      %p199 = scmp.eq.s32.totalorder %s32, 0
      %p200 = por %p198, %p199
      %s201 = ssub.s32 %s26, %s33
      %p202 = scmp.eq.s32.totalorder %s201, 0
      %s204 = sadd.s32 %s203, 1
      %s205 = scalar_select %p202, %s203, %s204
      %p208 = pneg %p202
      %p209 = scmp.eq.s32.totalorder %s26, 1
      %p210 = por %p208, %p209
      %p211 = scmp.ne.s32.totalorder %s203, %s206
      %p212 = scmp.eq.s32.totalorder %s26, 0
      %p213 = por %p211, %p212
      %p214 = scmp.ne.s32.totalorder %s203, %s206
      %p215 = scmp.eq.s32.totalorder %s31, 1
      %p216 = por %p214, %p215
      %p217 = scmp.ne.s32.totalorder %s206, %s207
      %p218 = scmp.eq.s32.totalorder %s31, 0
      %p219 = por %p217, %p218
      %p220 = scmp.ne.s32.totalorder %s206, %s207
      %p221 = scmp.eq.s32.totalorder %s32, 1
      %p222 = por %p220, %p221
      %p224 = scmp.ne.s32.totalorder %s207, %s223
      %p225 = scmp.eq.s32.totalorder %s32, 0
      %p226 = por %p224, %p225
      %p227 = scmp.le.s32.totalorder 1, %s26
      %p228 = scmp.lt.s32.totalorder %s26, 3
      %p229 = pnand %p227, %p228
      %p230 = pneg %p229
      // Predicated region
      $region9: #{tpu_custom_call.1} parent=5 // pred_check
        _
      $region10: #{tpu_custom_call.1} parent=5 // pred_check_branch
        %232 = sbr.rel (%p229) target = $region12
      $region11: #{tpu_custom_call.1} parent=5 // pred_region
        %s233 = ssub.s32 %s26, 1
        // Predicated region
        $region13: #{tpu_custom_call.1} parent=11 // pred_check
          %p234 = pneg %p99
        $region14: #{tpu_custom_call.1} parent=11 // pred_check_branch
          %236 = sbr.rel (%p234) target = $region16
        $region15: #{tpu_custom_call.1} parent=11 // pred_region
          %238 = vsyncadd [#allocation6], 0
          %s239 = sshll.u32 %s2, 4
          %s240 = int_to_ptr.hbm [resolvable:$true] %s239
          %s241 = sshll.u32 [#allocation7], 4
          %s242 = int_to_ptr.vmem [resolvable:$true] %s241
          %247 = dma.hbm_to_vmem [thread:$0]  %s240, 2048, %s242, [#allocation6], 128, 128, 8
        $region16: #{tpu_custom_call.1} parent=11 // pred_fallthru
          _
        // Predicated region
        $region17: #{tpu_custom_call.1} parent=11 // pred_check
          %p248 = pneg %p120
        $region18: #{tpu_custom_call.1} parent=11 // pred_check_branch
          %250 = sbr.rel (%p248) target = $region20
        $region19: #{tpu_custom_call.1} parent=11 // pred_region
          _
        $region20: #{tpu_custom_call.1} parent=11 // pred_fallthru
          _
        // Predicated region
        $region21: #{tpu_custom_call.1} parent=11 // pred_check
          %p251 = pneg %p141
        $region22: #{tpu_custom_call.1} parent=11 // pred_check_branch
          %253 = sbr.rel (%p251) target = $region24
        $region23: #{tpu_custom_call.1} parent=11 // pred_region
          _
        $region24: #{tpu_custom_call.1} parent=11 // pred_fallthru
          _
      $region12: #{tpu_custom_call.1} parent=5 // pred_fallthru
        _
      %p254 = scmp.lt.s32.totalorder %s26, 2
      // Predicated region
      $region25: #{tpu_custom_call.1} parent=5 // pred_check
        %p255 = pneg %p254
      $region26: #{tpu_custom_call.1} parent=5 // pred_check_branch
        %257 = sbr.rel (%p255) target = $region28
      $region27: #{tpu_custom_call.1} parent=5 // pred_region
        // Predicated region
        $region29: #{tpu_custom_call.1} parent=27 // pred_check
          %p258 = pneg %p46
        $region30: #{tpu_custom_call.1} parent=27 // pred_check_branch
          %260 = sbr.rel (%p258) target = $region32
        $region31: #{tpu_custom_call.1} parent=27 // pred_region
          %s261 = sand.u32 %s36, 1
          %s262 = scalar_lea.sflag [#allocation3], %s261
          %s263 = sand.u32 %s36, 1
          %s264 = smul.addr %s263, 16
          %s265 = scalar_lea.vmem [#allocation2], %s264
          %s266 = smul.u32 2, %s26
          %268 = vsyncadd %s262, 0
          %s269 = smul.addr %s266, 8
          %s270 = scalar_lea.hbm %s0, %s269
          %s271 = sshll.u32 %s270, 4
          %s272 = int_to_ptr.hbm [resolvable:$true] %s271
          %s273 = sshll.u32 %s265, 4
          %s274 = int_to_ptr.vmem [resolvable:$true] %s273
          %279 = dma.hbm_to_vmem [thread:$0]  %s272, 256, %s274, %s262, 128, 128, 8
        $region32: #{tpu_custom_call.1} parent=27 // pred_fallthru
          _
        // Predicated region
        $region33: #{tpu_custom_call.1} parent=27 // pred_check
          %p280 = pneg %p72
        $region34: #{tpu_custom_call.1} parent=27 // pred_check_branch
          %282 = sbr.rel (%p280) target = $region36
        $region35: #{tpu_custom_call.1} parent=27 // pred_region
          %s283 = sand.u32 %s26, 1
          %s284 = scalar_lea.sflag [#allocation6], %s283
          %s285 = sand.u32 %s62, 1
          %s286 = smul.addr %s285, 16
          %s287 = scalar_lea.vmem [#allocation5], %s286
          %s288 = smul.u32 2, %s26
          %290 = vsyncadd %s284, 0
          %s291 = smul.addr %s288, 8
          %s292 = scalar_lea.hbm %s1, %s291
          %s293 = sshll.u32 %s292, 4
          %s294 = int_to_ptr.hbm [resolvable:$true] %s293
          %s295 = sshll.u32 %s287, 4
          %s296 = int_to_ptr.vmem [resolvable:$true] %s295
          %301 = dma.hbm_to_vmem [thread:$0]  %s294, 256, %s296, %s284, 128, 128, 8
        $region36: #{tpu_custom_call.1} parent=27 // pred_fallthru
          _
      $region28: #{tpu_custom_call.1} parent=5 // pred_fallthru
        _
      %p302 = scmp.le.s32.totalorder 1, %s26
      %p303 = scmp.lt.s32.totalorder %s26, 3
      %p304 = pnand %p302, %p303
      %p305 = pneg %p304
      // Predicated region
      $region37: #{tpu_custom_call.1} parent=5 // pred_check
        _
      $region38: #{tpu_custom_call.1} parent=5 // pred_check_branch
        %307 = sbr.rel (%p304) target = $region40
      $region39: #{tpu_custom_call.1} parent=5 // pred_region
        %s308 = ssub.s32 %s26, 1
        %s309 = sand.u32 %s39, 1
        %s310 = scalar_lea.sflag [#allocation3], %s309
        %s311 = sand.u32 %s39, 1
        %s312 = smul.addr %s311, 16
        %s313 = scalar_lea.vmem [#allocation2], %s312
        // Predicated region
        $region41: #{tpu_custom_call.1} parent=39 // pred_check
          %p314 = pneg %p52
        $region42: #{tpu_custom_call.1} parent=39 // pred_check_branch
          %316 = sbr.rel (%p314) target = $region44
        $region43: #{tpu_custom_call.1} parent=39 // pred_region
          %318 = dma.done %s310, 256
        $region44: #{tpu_custom_call.1} parent=39 // pred_fallthru
          _
        %s319 = sand.u32 %s31, 1
        %s320 = scalar_lea.sflag [#allocation6], %s319
        %s321 = sand.u32 %s65, 1
        %s322 = smul.addr %s321, 16
        %s323 = scalar_lea.vmem [#allocation5], %s322
        // Predicated region
        $region45: #{tpu_custom_call.1} parent=39 // pred_check
          %p324 = pneg %p78
        $region46: #{tpu_custom_call.1} parent=39 // pred_check_branch
          %326 = sbr.rel (%p324) target = $region48
        $region47: #{tpu_custom_call.1} parent=39 // pred_region
          %328 = dma.done %s320, 256
        $region48: #{tpu_custom_call.1} parent=39 // pred_fallthru
          _
        // Predicated region
        $region49: #{tpu_custom_call.1} parent=39 // pred_check
          %p329 = pneg %p99
        $region50: #{tpu_custom_call.1} parent=39 // pred_check_branch
          %331 = sbr.rel (%p329) target = $region52
        $region51: #{tpu_custom_call.1} parent=39 // pred_region
          %333 = dma.done [#allocation6], 2048
        $region52: #{tpu_custom_call.1} parent=39 // pred_fallthru
          _
        %s334 = sand.u32 %s39, 1
        %s335 = scalar_lea.sflag [#allocation3], %s334
        %s336 = sand.u32 %s39, 1
        %s337 = smul.addr %s336, 16
        %s338 = scalar_lea.vmem [#allocation2], %s337
        %p339 = pneg %p52
        %p340 = pneg %p49
        %s341 = sand.u32 %s31, 1
        %s342 = scalar_lea.sflag [#allocation6], %s341
        %s343 = sand.u32 %s65, 1
        %s344 = smul.addr %s343, 16
        %s345 = scalar_lea.vmem [#allocation5], %s344
        %p346 = pneg %p78
        %p347 = pneg %p75
        %p348 = pneg %p99
        %p349 = pneg %p96
        %p350 = pneg %p120
        %p351 = pneg %p117
        %p352 = pneg %p141
        %p353 = pneg %p138
        %p354 = pneg %p167
        %p355 = pneg %p164
        %s356 = sand.u32 %s154, 1
        %s357 = scalar_lea.sflag [#allocation4], %s356
        %s358 = sand.u32 %s154, 1
        %s359 = scalar_lea.vmem [#allocation8], %s358
        %p360 = pneg %p193
        %p361 = pneg %p190
        %s362 = sand.u32 %s31, 1
        %s363 = scalar_lea.sflag [#allocation10], %s362
        %s364 = sand.u32 %s180, 1
        %s365 = smul.addr %s364, 16
        %s366 = scalar_lea.vmem [#allocation9], %s365
        %p367 = pneg %p219
        %p368 = pneg %p216
        %s369 = sand.u32 %s31, 1
        %s370 = scalar_lea.sflag [#allocation10], %s369
        %s371 = sand.u32 %s206, 1
        %s372 = smul.addr %s371, 16
        %s373 = scalar_lea.vmem [#allocation11], %s372
        %s374 = smul.u32 2, %s31
        %s375 = smul.u32 2, %s31
        %s376 = smul.u32 2, %s31
        %s377 = smul.u32 2, %s31
        %v378 = vld [vmem:[%s313] sm:$0xff]
        %v379 = vld [vmem:[%s313 + $0x8] sm:$0xff]
        %v380 = vld [vmem:[%s323] sm:$0xff]
        %v381 = vld [vmem:[%s323 + $0x8] sm:$0xff]
        %v382 = vld [vmem:[#allocation7] sm:$0xff]
        %v383 = vld [vmem:[#allocation7 + $0x8] sm:$0xff]
        %v384 = vld [vmem:[#allocation7 + $0x10] sm:$0xff]
        %v385 = vld [vmem:[#allocation7 + $0x18] sm:$0xff]
        %v386 = vld [vmem:[#allocation7 + $0x20] sm:$0xff]
        %v387 = vld [vmem:[#allocation7 + $0x28] sm:$0xff]
        %v388 = vld [vmem:[#allocation7 + $0x30] sm:$0xff]
        %v389 = vld [vmem:[#allocation7 + $0x38] sm:$0xff]
        %v390 = vld [vmem:[#allocation7 + $0x40] sm:$0xff]
        %v391 = vld [vmem:[#allocation7 + $0x48] sm:$0xff]
        %v392 = vld [vmem:[#allocation7 + $0x50] sm:$0xff]
        %v393 = vld [vmem:[#allocation7 + $0x58] sm:$0xff]
        %v394 = vld [vmem:[#allocation7 + $0x60] sm:$0xff]
        %v395 = vld [vmem:[#allocation7 + $0x68] sm:$0xff]
        %v396 = vld [vmem:[#allocation7 + $0x70] sm:$0xff]
        %v397 = vld [vmem:[#allocation7 + $0x78] sm:$0xff]
        %v398 = vld [vmem:[%s3] sm:$0x1]
        %v399 = vld [vmem:[%s4] sm:$0x1]
        %v401 = vperm.slane %v399, 0
        %403 = vmatpush.msra.mxu0 %v397
        %404 = vmatpush.msra.mxu0 %v396
        %405 = vmatpush.msra.mxu0 %v395
        %406 = vmatpush.msra.mxu0 %v394
        %407 = vmatpush.msra.mxu0 %v393
        %408 = vmatpush.msra.mxu0 %v392
        %409 = vmatpush.msra.mxu0 %v391
        %410 = vmatpush.msra.mxu0 %v390
        %411 = vmatpush.msra.mxu0 %v389
        %412 = vmatpush.msra.mxu0 %v388
        %413 = vmatpush.msra.mxu0 %v387
        %414 = vmatpush.msra.mxu0 %v386
        %415 = vmatpush.msra.mxu0 %v385
        %416 = vmatpush.msra.mxu0 %v384
        %417 = vmatpush.msra.mxu0 %v383
        %418 = vmatpush.msra.mxu0 %v382
        %419 = vmatmul.f32.gmra.mxu0 %v378
        %v420 = vpop.f32.mrf.mxu0
        %v421 = vadd.f32 %v401, %v420
        %422 = vmatmul.f32.gmra.mxu0 %v379
        %v423 = vpop.f32.mrf.mxu0
        %v424 = vadd.f32 %v401, %v423
        %425 = vdwg.mxu0
        %426 = vst [vmem:[%s373] sm:$0xff] %v421
        %427 = vst [vmem:[%s373 + $0x8] sm:$0xff] %v424
        %v429 = vperm.slane %v398, 0
        %431 = vmatpush.xpose.msra.mxu0 %v397
        %432 = vmatpush.xpose.msra.mxu0 %v396
        %433 = vmatpush.xpose.msra.mxu0 %v395
        %434 = vmatpush.xpose.msra.mxu0 %v394
        %435 = vmatpush.xpose.msra.mxu0 %v393
        %436 = vmatpush.xpose.msra.mxu0 %v392
        %437 = vmatpush.xpose.msra.mxu0 %v391
        %438 = vmatpush.xpose.msra.mxu0 %v390
        %439 = vmatpush.xpose.msra.mxu0 %v389
        %440 = vmatpush.xpose.msra.mxu0 %v388
        %441 = vmatpush.xpose.msra.mxu0 %v387
        %442 = vmatpush.xpose.msra.mxu0 %v386
        %443 = vmatpush.xpose.msra.mxu0 %v385
        %444 = vmatpush.xpose.msra.mxu0 %v384
        %445 = vmatpush.xpose.msra.mxu0 %v383
        %446 = vmatpush.xpose.msra.mxu0 %v382
        %447 = vmatmul.f32.gmra.mxu0 %v380
        %v448 = vpop.f32.mrf.mxu0
        %v449 = vadd.f32 %v429, %v448
        %450 = vmatmul.f32.gmra.mxu0 %v381
        %v451 = vpop.f32.mrf.mxu0
        %v452 = vadd.f32 %v429, %v451
        %453 = vdwg.mxu0
        %v454 = vsub.f32 %v449, %v378
        %v455 = vsub.f32 %v452, %v379
        %456 = vst [vmem:[%s366] sm:$0xff] %v454
        %457 = vst [vmem:[%s366 + $0x8] sm:$0xff] %v455
        %v458 = vmul.f32 %v380, %v421
        %v459 = vmul.f32 %v381, %v424
        %v460 = vmul.f32 %v378, 0.5
        %v461 = vmul.f32 %v379, 0.5
        %v462 = vsub.f32 %v429, %v460
        %v463 = vsub.f32 %v429, %v461
        %v464 = vmul.f32 %v378, %v462
        %v465 = vmul.f32 %v379, %v463
        %466 = vmatpush.xpose.msra.mxu0 0.0
        %467 = vmatpush.xpose.msra.mxu0 0.0
        %468 = vmatpush.xpose.msra.mxu0 0.0
        %469 = vmatpush.xpose.msra.mxu0 0.0
        %470 = vmatpush.xpose.msra.mxu0 0.0
        %471 = vmatpush.xpose.msra.mxu0 0.0
        %472 = vmatpush.xpose.msra.mxu0 0.0
        %473 = vmatpush.xpose.msra.mxu0 0.0
        %474 = vmatpush.xpose.msra.mxu0 0.0
        %475 = vmatpush.xpose.msra.mxu0 0.0
        %476 = vmatpush.xpose.msra.mxu0 0.0
        %477 = vmatpush.xpose.msra.mxu0 0.0
        %478 = vmatpush.xpose.msra.mxu0 0.0
        %479 = vmatpush.xpose.msra.mxu0 0.0
        %480 = vmatpush.xpose.msra.mxu0 %v465
        %481 = vmatpush.xpose.msra.mxu0 %v464
        %482 = vmatmul.f32.gmra.mxu0 1.0
        %v483 = vpop.f32.mrf.mxu0
        %v484 = vadd.f32 0.0, %v483
        %485 = vdwg.mxu0
        %486 = vmatpush.xpose.msra.mxu0 0.0
        %487 = vmatpush.xpose.msra.mxu0 0.0
        %488 = vmatpush.xpose.msra.mxu0 0.0
        %489 = vmatpush.xpose.msra.mxu0 0.0
        %490 = vmatpush.xpose.msra.mxu0 0.0
        %491 = vmatpush.xpose.msra.mxu0 0.0
        %492 = vmatpush.xpose.msra.mxu0 0.0
        %493 = vmatpush.xpose.msra.mxu0 0.0
        %494 = vmatpush.xpose.msra.mxu0 0.0
        %495 = vmatpush.xpose.msra.mxu0 0.0
        %496 = vmatpush.xpose.msra.mxu0 0.0
        %497 = vmatpush.xpose.msra.mxu0 0.0
        %498 = vmatpush.xpose.msra.mxu0 0.0
        %499 = vmatpush.xpose.msra.mxu0 0.0
        %500 = vmatpush.xpose.msra.mxu0 %v459
        %501 = vmatpush.xpose.msra.mxu0 %v458
        %502 = vmatmul.f32.gmra.mxu0 1.0
        %v503 = vpop.f32.mrf.mxu0
        %v504 = vadd.f32 %v484, %v503
        %505 = vdwg.mxu0
        %vm506 = vcmask 122880
        %507 = vst.msk [vmem:[%s359] sm:$0x1] %vm506, %v504
        %s508 = sand.u32 %s154, 1
        %s509 = scalar_lea.sflag [#allocation4], %s508
        %s510 = sand.u32 %s154, 1
        %s511 = scalar_lea.vmem [#allocation8], %s510
        %s512 = sand.u32 %s31, 1
        %s513 = scalar_lea.sflag [#allocation10], %s512
        %s514 = sand.u32 %s180, 1
        %s515 = smul.addr %s514, 16
        %s516 = scalar_lea.vmem [#allocation9], %s515
        %s517 = sand.u32 %s31, 1
        %s518 = scalar_lea.sflag [#allocation10], %s517
        %s519 = sand.u32 %s206, 1
        %s520 = smul.addr %s519, 16
        %s521 = scalar_lea.vmem [#allocation11], %s520
        // Predicated region
        $region53: #{tpu_custom_call.1} parent=39 // pred_check
          %p522 = pneg %p164
        $region54: #{tpu_custom_call.1} parent=39 // pred_check_branch
          %524 = sbr.rel (%p522) target = $region56
        $region55: #{tpu_custom_call.1} parent=39 // pred_region
          %526 = vsyncadd %s509, 0
          %s527 = scalar_lea.hbm %s5, %s31
          %s529 = sshll.u32 %s511, 4
          %s530 = int_to_ptr.vmem [resolvable:$true] %s529
          %s531 = sshll.u32 %s527, 4
          %s532 = int_to_ptr.hbm [resolvable:$true] %s531
          %534 = dma.vmem_to_hbm [thread:$0]  %s530, 16, %s532, %s509
        $region56: #{tpu_custom_call.1} parent=39 // pred_fallthru
          _
        // Predicated region
        $region57: #{tpu_custom_call.1} parent=39 // pred_check
          %p535 = pneg %p190
        $region58: #{tpu_custom_call.1} parent=39 // pred_check_branch
          %537 = sbr.rel (%p535) target = $region60
        $region59: #{tpu_custom_call.1} parent=39 // pred_region
          %s538 = smul.u32 2, %s31
          %540 = vsyncadd %s513, 0
          %s541 = smul.addr %s538, 8
          %s542 = scalar_lea.hbm %s6, %s541
          %s543 = sshll.u32 %s516, 4
          %s544 = int_to_ptr.vmem [resolvable:$true] %s543
          %s545 = sshll.u32 %s542, 4
          %s546 = int_to_ptr.hbm [resolvable:$true] %s545
          %551 = dma.vmem_to_hbm [thread:$0]  %s544, 256, %s546, %s513, 128, 128, 8
        $region60: #{tpu_custom_call.1} parent=39 // pred_fallthru
          _
        // Predicated region
        $region61: #{tpu_custom_call.1} parent=39 // pred_check
          %p552 = pneg %p216
        $region62: #{tpu_custom_call.1} parent=39 // pred_check_branch
          %554 = sbr.rel (%p552) target = $region64
        $region63: #{tpu_custom_call.1} parent=39 // pred_region
          %s555 = smul.u32 2, %s31
          %557 = vsyncadd %s518, 0
          %s558 = smul.addr %s555, 8
          %s559 = scalar_lea.hbm %s7, %s558
          %s560 = sshll.u32 %s521, 4
          %s561 = int_to_ptr.vmem [resolvable:$true] %s560
          %s562 = sshll.u32 %s559, 4
          %s563 = int_to_ptr.hbm [resolvable:$true] %s562
          %568 = dma.vmem_to_hbm [thread:$0]  %s561, 256, %s563, %s518, 128, 128, 8
        $region64: #{tpu_custom_call.1} parent=39 // pred_fallthru
          _
      $region40: #{tpu_custom_call.1} parent=5 // pred_fallthru
        _
      %p569 = scmp.le.s32.totalorder 2, %s26
      // Predicated region
      $region65: #{tpu_custom_call.1} parent=5 // pred_check
        %p570 = pneg %p569
      $region66: #{tpu_custom_call.1} parent=5 // pred_check_branch
        %572 = sbr.rel (%p570) target = $region68
      $region67: #{tpu_custom_call.1} parent=5 // pred_region
        %s573 = ssub.s32 %s26, 2
        // Predicated region
        $region69: #{tpu_custom_call.1} parent=67 // pred_check
          %p574 = pneg %p170
        $region70: #{tpu_custom_call.1} parent=67 // pred_check_branch
          %576 = sbr.rel (%p574) target = $region72
        $region71: #{tpu_custom_call.1} parent=67 // pred_region
          %s577 = sand.u32 %s155, 1
          %s578 = scalar_lea.sflag [#allocation4], %s577
          %s579 = sand.u32 %s155, 1
          %s580 = scalar_lea.vmem [#allocation8], %s579
          %582 = dma.done %s578, 16
        $region72: #{tpu_custom_call.1} parent=67 // pred_fallthru
          _
        // Predicated region
        $region73: #{tpu_custom_call.1} parent=67 // pred_check
          %p583 = pneg %p196
        $region74: #{tpu_custom_call.1} parent=67 // pred_check_branch
          %585 = sbr.rel (%p583) target = $region76
        $region75: #{tpu_custom_call.1} parent=67 // pred_region
          %s586 = sand.u32 %s32, 1
          %s587 = scalar_lea.sflag [#allocation10], %s586
          %s588 = sand.u32 %s181, 1
          %s589 = smul.addr %s588, 16
          %s590 = scalar_lea.vmem [#allocation9], %s589
          %592 = dma.done %s587, 256
        $region76: #{tpu_custom_call.1} parent=67 // pred_fallthru
          _
        // Predicated region
        $region77: #{tpu_custom_call.1} parent=67 // pred_check
          %p593 = pneg %p222
        $region78: #{tpu_custom_call.1} parent=67 // pred_check_branch
          %595 = sbr.rel (%p593) target = $region80
        $region79: #{tpu_custom_call.1} parent=67 // pred_region
          %s596 = sand.u32 %s32, 1
          %s597 = scalar_lea.sflag [#allocation10], %s596
          %s598 = sand.u32 %s207, 1
          %s599 = smul.addr %s598, 16
          %s600 = scalar_lea.vmem [#allocation11], %s599
          %602 = dma.done %s597, 256
        $region80: #{tpu_custom_call.1} parent=67 // pred_fallthru
          _
      $region68: #{tpu_custom_call.1} parent=5 // pred_fallthru
        _
    $region6: #{tpu_custom_call.1} parent=1 // loop_footer
      %s30 = sadd.s32 1, %s26
    $region7: #{tpu_custom_call.1} parent=1 // loop_footer_branch
      %25 = sbr.rel target = $region3
    $region8: #{tpu_custom_call.1} parent=1 // loop_exit
      _
    %603 = vsyncpa [#allocation3], 1
    %s604 = scalar_lea.sflag [#allocation3], 1
    %605 = vsyncpa %s604, 1
    %606 = vsyncpa [#allocation6], 1
    %s607 = scalar_lea.sflag [#allocation6], 1
    %608 = vsyncpa %s607, 1
    %609 = vsyncpa [#allocation4], 1
    %s610 = scalar_lea.sflag [#allocation4], 1
    %611 = vsyncpa %s610, 1
    %612 = vsyncpa [#allocation10], 1
    %s613 = scalar_lea.sflag [#allocation10], 1
    %614 = vsyncpa %s613, 1

// kernel: tpu_custom_call.1
$region0: #{tpu_custom_call.1}
  #allocation0 [shape = 'u32[]', space=smem, size = 0x4, offset = 0x4, fixed_abs, tag = 'smem constant byte address 0x4 - core index']
  #allocation1 [shape = 'u32[72,128]{1,0:T(1,128)}', space=vmem, size = 0x9000, scoped, tag = 'internal scratch']
  %s0 = inlined_call_operand.hbm [shape: f32[32,128], index: 0, kind: input, shape index: {}]
  %s1 = inlined_call_operand.hbm [shape: f32[32,128], index: 1, kind: input, shape index: {}]
  %s2 = inlined_call_operand.hbm [shape: f32[128,128], index: 2, kind: input, shape index: {}]
  %s3 = inlined_call_operand.vmem [shape: f32[1,128], index: 3, kind: input, shape index: {}]
  %s4 = inlined_call_operand.vmem [shape: f32[1,128], index: 4, kind: input, shape index: {}]
  %s5 = inlined_call_operand.hbm [shape: f32[2,1,16], index: 5, kind: output, shape index: {0}]
  %s6 = inlined_call_operand.hbm [shape: f32[32,128], index: 6, kind: output, shape index: {1}]
  %s7 = inlined_call_operand.hbm [shape: f32[32,128], index: 7, kind: output, shape index: {2}]
  %8 = xla_tuple %s5, %s6, %s7
  %s9 = sld [smem:[#allocation0]]
  $region81: #{tpu_custom_call.1} parent=0
    _
  %s11 = ssub.s32 1, %s9
  %s12 = scalar_select 0, %s11, %s9
  $region1: #{tpu_custom_call.1} parent=0
    #allocation2 [shape = 'u8[16384]{0}', space=vmem, size = 0x4000, scoped, tag = 'input window, operand 0']
    #allocation3 [shape = 's32[2]{0}', space=sflag, size = 0x8, scoped, tag = 'scoped memory for tpu_custom_call.1']
    #allocation4 [shape = 's32[2]{0}', space=sflag, size = 0x8, scoped, tag = 'scoped memory for tpu_custom_call.1']
    #allocation5 [shape = 'u8[16384]{0}', space=vmem, size = 0x4000, scoped, tag = 'input window, operand 1']
    #allocation6 [shape = 's32[2]{0}', space=sflag, size = 0x8, scoped, tag = 'scoped memory for tpu_custom_call.1']
    #allocation7 [shape = 'u8[65536]{0}', space=vmem, size = 0x10000, scoped, tag = 'input window, operand 2, single buffered']
    #allocation8 [shape = 'u8[1024]{0}', space=vmem, size = 0x400, scoped, tag = 'output window, operand 0']
    #allocation9 [shape = 'u8[16384]{0}', space=vmem, size = 0x4000, scoped, tag = 'output window, operand 1']
    #allocation10 [shape = 's32[2]{0}', space=sflag, size = 0x8, scoped, tag = 'scoped memory for tpu_custom_call.1']
    #allocation11 [shape = 'u8[16384]{0}', space=vmem, size = 0x4000, scoped, tag = 'output window, operand 2']
    %13 = vsyncpa [#allocation3], 0
    %s14 = scalar_lea.sflag [#allocation3], 1
    %15 = vsyncpa %s14, 0
    %16 = vsyncpa [#allocation6], 0
    %s17 = scalar_lea.sflag [#allocation6], 1
    %18 = vsyncpa %s17, 0
    %19 = vsyncpa [#allocation4], 0
    %s20 = scalar_lea.sflag [#allocation4], 1
    %21 = vsyncpa %s20, 0
    %22 = vsyncpa [#allocation10], 0
    %s23 = scalar_lea.sflag [#allocation10], 1
    %24 = vsyncpa %s23, 0
    loop: start=0, step=1, limit=4
    $region2: #{tpu_custom_call.1} parent=1 // loop_pre_header
      _
    $region3: #{tpu_custom_call.1} parent=1 // loop_header
      %s26 = sphi 0, %s30
      %p27 = scmp.ge.s32.totalorder %s26, 4
      %s36 = sphi 0, %s38
      %s39 = sphi 0, %s36
      %s40 = sphi 0, %s39
      %s56 = sphi 0, %s40
      %s62 = sphi 0, %s64
      %s65 = sphi 0, %s62
      %s66 = sphi 0, %s65
      %s82 = sphi 0, %s66
      %s86 = sphi 0, %s86
      %s88 = sphi 0, %s86
      %s89 = sphi 0, %s88
      %s103 = sphi 0, %s89
      %s107 = sphi 0, %s107
      %s109 = sphi 0, %s107
      %s110 = sphi 0, %s109
      %s124 = sphi 0, %s110
      %s128 = sphi 0, %s128
      %s130 = sphi 0, %s128
      %s131 = sphi 0, %s130
      %s145 = sphi 0, %s131
      %s151 = sphi 0, %s153
      %s154 = sphi 0, %s151
      %s155 = sphi 0, %s154
      %s171 = sphi 0, %s155
      %s177 = sphi 0, %s179
      %s180 = sphi 0, %s177
      %s181 = sphi 0, %s180
      %s197 = sphi 0, %s181
      %s203 = sphi 0, %s205
      %s206 = sphi 0, %s203
      %s207 = sphi 0, %s206
      %s223 = sphi 0, %s207
    $region4: #{tpu_custom_call.1} parent=1 // loop_header_branch
      %29 = sbr.rel (%p27) target = $region8
    $region5: #{tpu_custom_call.1} parent=1 // loop_body
      %s31 = ssub.s32 %s26, 1
      %s32 = ssub.s32 %s26, 2
      %s33 = sadd.s32 %s26, 1
      %s34 = ssub.s32 %s26, %s33
      %p35 = scmp.eq.s32.totalorder %s34, 0
      %s37 = sadd.s32 %s36, 1
      %s38 = scalar_select %p35, %s36, %s37
      %p41 = pneg %p35
      %p42 = scmp.eq.s32.totalorder %s26, 1
      %p43 = por %p41, %p42
      %p44 = scmp.ne.s32.totalorder %s36, %s39
      %p45 = scmp.eq.s32.totalorder %s26, 0
      %p46 = por %p44, %p45
      %p47 = scmp.ne.s32.totalorder %s36, %s39
      %p48 = scmp.eq.s32.totalorder %s31, 1
      %p49 = por %p47, %p48
      %p50 = scmp.ne.s32.totalorder %s39, %s40
      %p51 = scmp.eq.s32.totalorder %s31, 0
      %p52 = por %p50, %p51
      %p53 = scmp.ne.s32.totalorder %s39, %s40
      %p54 = scmp.eq.s32.totalorder %s32, 1
      %p55 = por %p53, %p54
      %p57 = scmp.ne.s32.totalorder %s40, %s56
      %p58 = scmp.eq.s32.totalorder %s32, 0
      %p59 = por %p57, %p58
      %s60 = ssub.s32 %s26, %s33
      %p61 = scmp.eq.s32.totalorder %s60, 0
      %s63 = sadd.s32 %s62, 1
      %s64 = scalar_select %p61, %s62, %s63
      %p67 = pneg %p61
      %p68 = scmp.eq.s32.totalorder %s26, 1
      %p69 = por %p67, %p68
      %p70 = scmp.ne.s32.totalorder %s62, %s65
      %p71 = scmp.eq.s32.totalorder %s26, 0
      %p72 = por %p70, %p71
      %p73 = scmp.ne.s32.totalorder %s62, %s65
      %p74 = scmp.eq.s32.totalorder %s31, 1
      %p75 = por %p73, %p74
      %p76 = scmp.ne.s32.totalorder %s65, %s66
      %p77 = scmp.eq.s32.totalorder %s31, 0
      %p78 = por %p76, %p77
      %p79 = scmp.ne.s32.totalorder %s65, %s66
      %p80 = scmp.eq.s32.totalorder %s32, 1
      %p81 = por %p79, %p80
      %p83 = scmp.ne.s32.totalorder %s66, %s82
      %p84 = scmp.eq.s32.totalorder %s32, 0
      %p85 = por %p83, %p84
      %s87 = sadd.s32 %s86, 1
      %p90 = scmp.eq.s32.totalorder %s26, 1
      %p91 = scmp.ne.s32.totalorder %s86, %s88
      %p92 = scmp.eq.s32.totalorder %s26, 0
      %p93 = por %p91, %p92
      %p94 = scmp.ne.s32.totalorder %s86, %s88
      %p95 = scmp.eq.s32.totalorder %s31, 1
      %p96 = por %p94, %p95
      %p97 = scmp.ne.s32.totalorder %s88, %s89
      %p98 = scmp.eq.s32.totalorder %s31, 0
      %p99 = por %p97, %p98
      %p100 = scmp.ne.s32.totalorder %s88, %s89
      %p101 = scmp.eq.s32.totalorder %s32, 1
      %p102 = por %p100, %p101
      %p104 = scmp.ne.s32.totalorder %s89, %s103
      %p105 = scmp.eq.s32.totalorder %s32, 0
      %p106 = por %p104, %p105
      %s108 = sadd.s32 %s107, 1
      %p111 = scmp.eq.s32.totalorder %s26, 1
      %p112 = scmp.ne.s32.totalorder %s107, %s109
      %p113 = scmp.eq.s32.totalorder %s26, 0
      %p114 = por %p112, %p113
      %p115 = scmp.ne.s32.totalorder %s107, %s109
      %p116 = scmp.eq.s32.totalorder %s31, 1
      %p117 = por %p115, %p116
      %p118 = scmp.ne.s32.totalorder %s109, %s110
      %p119 = scmp.eq.s32.totalorder %s31, 0
      %p120 = por %p118, %p119
      %p121 = scmp.ne.s32.totalorder %s109, %s110
      %p122 = scmp.eq.s32.totalorder %s32, 1
      %p123 = por %p121, %p122
      %p125 = scmp.ne.s32.totalorder %s110, %s124
      %p126 = scmp.eq.s32.totalorder %s32, 0
      %p127 = por %p125, %p126
      %s129 = sadd.s32 %s128, 1
      %p132 = scmp.eq.s32.totalorder %s26, 1
      %p133 = scmp.ne.s32.totalorder %s128, %s130
      %p134 = scmp.eq.s32.totalorder %s26, 0
      %p135 = por %p133, %p134
      %p136 = scmp.ne.s32.totalorder %s128, %s130
      %p137 = scmp.eq.s32.totalorder %s31, 1
      %p138 = por %p136, %p137
      %p139 = scmp.ne.s32.totalorder %s130, %s131
      %p140 = scmp.eq.s32.totalorder %s31, 0
      %p141 = por %p139, %p140
      %p142 = scmp.ne.s32.totalorder %s130, %s131
      %p143 = scmp.eq.s32.totalorder %s32, 1
      %p144 = por %p142, %p143
      %p146 = scmp.ne.s32.totalorder %s131, %s145
      %p147 = scmp.eq.s32.totalorder %s32, 0
      %p148 = por %p146, %p147
      %s149 = ssub.s32 %s26, %s33
      %p150 = scmp.eq.s32.totalorder %s149, 0
      %s152 = sadd.s32 %s151, 1
      %s153 = scalar_select %p150, %s151, %s152
      %p156 = pneg %p150
      %p157 = scmp.eq.s32.totalorder %s26, 1
      %p158 = por %p156, %p157
      %p159 = scmp.ne.s32.totalorder %s151, %s154
      %p160 = scmp.eq.s32.totalorder %s26, 0
      %p161 = por %p159, %p160
      %p162 = scmp.ne.s32.totalorder %s151, %s154
      %p163 = scmp.eq.s32.totalorder %s31, 1
      %p164 = por %p162, %p163
      %p165 = scmp.ne.s32.totalorder %s154, %s155
      %p166 = scmp.eq.s32.totalorder %s31, 0
      %p167 = por %p165, %p166
      %p168 = scmp.ne.s32.totalorder %s154, %s155
      %p169 = scmp.eq.s32.totalorder %s32, 1
      %p170 = por %p168, %p169
      %p172 = scmp.ne.s32.totalorder %s155, %s171
      %p173 = scmp.eq.s32.totalorder %s32, 0
      %p174 = por %p172, %p173
      %s175 = ssub.s32 %s26, %s33
      %p176 = scmp.eq.s32.totalorder %s175, 0
      %s178 = sadd.s32 %s177, 1
      %s179 = scalar_select %p176, %s177, %s178
      %p182 = pneg %p176
      %p183 = scmp.eq.s32.totalorder %s26, 1
      %p184 = por %p182, %p183
      %p185 = scmp.ne.s32.totalorder %s177, %s180
      %p186 = scmp.eq.s32.totalorder %s26, 0
      %p187 = por %p185, %p186
      %p188 = scmp.ne.s32.totalorder %s177, %s180
      %p189 = scmp.eq.s32.totalorder %s31, 1
      %p190 = por %p188, %p189
      %p191 = scmp.ne.s32.totalorder %s180, %s181
      %p192 = scmp.eq.s32.totalorder %s31, 0
      %p193 = por %p191, %p192
      %p194 = scmp.ne.s32.totalorder %s180, %s181
      %p195 = scmp.eq.s32.totalorder %s32, 1
      %p196 = por %p194, %p195
      %p198 = scmp.ne.s32.totalorder %s181, %s197
      %p199 = scmp.eq.s32.totalorder %s32, 0
      %p200 = por %p198, %p199
      %s201 = ssub.s32 %s26, %s33
      %p202 = scmp.eq.s32.totalorder %s201, 0
      %s204 = sadd.s32 %s203, 1
      %s205 = scalar_select %p202, %s203, %s204
      %p208 = pneg %p202
      %p209 = scmp.eq.s32.totalorder %s26, 1
      %p210 = por %p208, %p209
      %p211 = scmp.ne.s32.totalorder %s203, %s206
      %p212 = scmp.eq.s32.totalorder %s26, 0
      %p213 = por %p211, %p212
      %p214 = scmp.ne.s32.totalorder %s203, %s206
      %p215 = scmp.eq.s32.totalorder %s31, 1
      %p216 = por %p214, %p215
      %p217 = scmp.ne.s32.totalorder %s206, %s207
      %p218 = scmp.eq.s32.totalorder %s31, 0
      %p219 = por %p217, %p218
      %p220 = scmp.ne.s32.totalorder %s206, %s207
      %p221 = scmp.eq.s32.totalorder %s32, 1
      %p222 = por %p220, %p221
      %p224 = scmp.ne.s32.totalorder %s207, %s223
      %p225 = scmp.eq.s32.totalorder %s32, 0
      %p226 = por %p224, %p225
      %p227 = scmp.le.s32.totalorder 1, %s26
      %p228 = scmp.lt.s32.totalorder %s26, 3
      %p229 = pnand %p227, %p228
      %p230 = pneg %p229
      // Predicated region
      $region9: #{tpu_custom_call.1} parent=5 // pred_check
        _
      $region10: #{tpu_custom_call.1} parent=5 // pred_check_branch
        %232 = sbr.rel (%p229) target = $region12
      $region11: #{tpu_custom_call.1} parent=5 // pred_region
        %s233 = ssub.s32 %s26, 1
        // Predicated region
        $region13: #{tpu_custom_call.1} parent=11 // pred_check
          %p234 = pneg %p99
        $region14: #{tpu_custom_call.1} parent=11 // pred_check_branch
          %236 = sbr.rel (%p234) target = $region16
        $region15: #{tpu_custom_call.1} parent=11 // pred_region
          %238 = vsyncadd [#allocation6], 0
          %s239 = sshll.u32 %s2, 4
          %s240 = int_to_ptr.hbm [resolvable:$true] %s239
          %s241 = sshll.u32 [#allocation7], 4
          %s242 = int_to_ptr.vmem [resolvable:$true] %s241
          %247 = dma.hbm_to_vmem [thread:$0]  %s240, 2048, %s242, [#allocation6], 128, 128, 8
        $region16: #{tpu_custom_call.1} parent=11 // pred_fallthru
          _
        // Predicated region
        $region17: #{tpu_custom_call.1} parent=11 // pred_check
          %p248 = pneg %p120
        $region18: #{tpu_custom_call.1} parent=11 // pred_check_branch
          %250 = sbr.rel (%p248) target = $region20
        $region19: #{tpu_custom_call.1} parent=11 // pred_region
          _
        $region20: #{tpu_custom_call.1} parent=11 // pred_fallthru
          _
        // Predicated region
        $region21: #{tpu_custom_call.1} parent=11 // pred_check
          %p251 = pneg %p141
        $region22: #{tpu_custom_call.1} parent=11 // pred_check_branch
          %253 = sbr.rel (%p251) target = $region24
        $region23: #{tpu_custom_call.1} parent=11 // pred_region
          _
        $region24: #{tpu_custom_call.1} parent=11 // pred_fallthru
          _
      $region12: #{tpu_custom_call.1} parent=5 // pred_fallthru
        _
      %p254 = scmp.lt.s32.totalorder %s26, 2
      // Predicated region
      $region25: #{tpu_custom_call.1} parent=5 // pred_check
        %p255 = pneg %p254
      $region26: #{tpu_custom_call.1} parent=5 // pred_check_branch
        %257 = sbr.rel (%p255) target = $region28
      $region27: #{tpu_custom_call.1} parent=5 // pred_region
        // Predicated region
        $region29: #{tpu_custom_call.1} parent=27 // pred_check
          %p258 = pneg %p46
        $region30: #{tpu_custom_call.1} parent=27 // pred_check_branch
          %260 = sbr.rel (%p258) target = $region32
        $region31: #{tpu_custom_call.1} parent=27 // pred_region
          %s261 = sand.u32 %s36, 1
          %s262 = scalar_lea.sflag [#allocation3], %s261
          %s263 = sand.u32 %s36, 1
          %s264 = smul.addr %s263, 16
          %s265 = scalar_lea.vmem [#allocation2], %s264
          %s266 = smul.u32 2, %s26
          %268 = vsyncadd %s262, 0
          %s269 = smul.addr %s266, 8
          %s270 = scalar_lea.hbm %s0, %s269
          %s271 = sshll.u32 %s270, 4
          %s272 = int_to_ptr.hbm [resolvable:$true] %s271
          %s273 = sshll.u32 %s265, 4
          %s274 = int_to_ptr.vmem [resolvable:$true] %s273
          %279 = dma.hbm_to_vmem [thread:$0]  %s272, 256, %s274, %s262, 128, 128, 8
        $region32: #{tpu_custom_call.1} parent=27 // pred_fallthru
          _
        // Predicated region
        $region33: #{tpu_custom_call.1} parent=27 // pred_check
          %p280 = pneg %p72
        $region34: #{tpu_custom_call.1} parent=27 // pred_check_branch
          %282 = sbr.rel (%p280) target = $region36
        $region35: #{tpu_custom_call.1} parent=27 // pred_region
          %s283 = sand.u32 %s26, 1
          %s284 = scalar_lea.sflag [#allocation6], %s283
          %s285 = sand.u32 %s62, 1
          %s286 = smul.addr %s285, 16
          %s287 = scalar_lea.vmem [#allocation5], %s286
          %s288 = smul.u32 2, %s26
          %290 = vsyncadd %s284, 0
          %s291 = smul.addr %s288, 8
          %s292 = scalar_lea.hbm %s1, %s291
          %s293 = sshll.u32 %s292, 4
          %s294 = int_to_ptr.hbm [resolvable:$true] %s293
          %s295 = sshll.u32 %s287, 4
          %s296 = int_to_ptr.vmem [resolvable:$true] %s295
          %301 = dma.hbm_to_vmem [thread:$0]  %s294, 256, %s296, %s284, 128, 128, 8
        $region36: #{tpu_custom_call.1} parent=27 // pred_fallthru
          _
      $region28: #{tpu_custom_call.1} parent=5 // pred_fallthru
        _
      %p302 = scmp.le.s32.totalorder 1, %s26
      %p303 = scmp.lt.s32.totalorder %s26, 3
      %p304 = pnand %p302, %p303
      %p305 = pneg %p304
      // Predicated region
      $region37: #{tpu_custom_call.1} parent=5 // pred_check
        _
      $region38: #{tpu_custom_call.1} parent=5 // pred_check_branch
        %307 = sbr.rel (%p304) target = $region40
      $region39: #{tpu_custom_call.1} parent=5 // pred_region
        %s308 = ssub.s32 %s26, 1
        %s309 = sand.u32 %s39, 1
        %s310 = scalar_lea.sflag [#allocation3], %s309
        %s311 = sand.u32 %s39, 1
        %s312 = smul.addr %s311, 16
        %s313 = scalar_lea.vmem [#allocation2], %s312
        // Predicated region
        $region41: #{tpu_custom_call.1} parent=39 // pred_check
          %p314 = pneg %p52
        $region42: #{tpu_custom_call.1} parent=39 // pred_check_branch
          %316 = sbr.rel (%p314) target = $region44
        $region43: #{tpu_custom_call.1} parent=39 // pred_region
          %318 = dma.done %s310, 256
        $region44: #{tpu_custom_call.1} parent=39 // pred_fallthru
          _
        %s319 = sand.u32 %s31, 1
        %s320 = scalar_lea.sflag [#allocation6], %s319
        %s321 = sand.u32 %s65, 1
        %s322 = smul.addr %s321, 16
        %s323 = scalar_lea.vmem [#allocation5], %s322
        // Predicated region
        $region45: #{tpu_custom_call.1} parent=39 // pred_check
          %p324 = pneg %p78
        $region46: #{tpu_custom_call.1} parent=39 // pred_check_branch
          %326 = sbr.rel (%p324) target = $region48
        $region47: #{tpu_custom_call.1} parent=39 // pred_region
          %328 = dma.done %s320, 256
        $region48: #{tpu_custom_call.1} parent=39 // pred_fallthru
          _
        // Predicated region
        $region49: #{tpu_custom_call.1} parent=39 // pred_check
          %p329 = pneg %p99
        $region50: #{tpu_custom_call.1} parent=39 // pred_check_branch
          %331 = sbr.rel (%p329) target = $region52
        $region51: #{tpu_custom_call.1} parent=39 // pred_region
          %333 = dma.done [#allocation6], 2048
        $region52: #{tpu_custom_call.1} parent=39 // pred_fallthru
          _
        %s334 = sand.u32 %s39, 1
        %s335 = scalar_lea.sflag [#allocation3], %s334
        %s336 = sand.u32 %s39, 1
        %s337 = smul.addr %s336, 16
        %s338 = scalar_lea.vmem [#allocation2], %s337
        %p339 = pneg %p52
        %p340 = pneg %p49
        %s341 = sand.u32 %s31, 1
        %s342 = scalar_lea.sflag [#allocation6], %s341
        %s343 = sand.u32 %s65, 1
        %s344 = smul.addr %s343, 16
        %s345 = scalar_lea.vmem [#allocation5], %s344
        %p346 = pneg %p78
        %p347 = pneg %p75
        %p348 = pneg %p99
        %p349 = pneg %p96
        %p350 = pneg %p120
        %p351 = pneg %p117
        %p352 = pneg %p141
        %p353 = pneg %p138
        %p354 = pneg %p167
        %p355 = pneg %p164
        %s356 = sand.u32 %s154, 1
        %s357 = scalar_lea.sflag [#allocation4], %s356
        %s358 = sand.u32 %s154, 1
        %s359 = scalar_lea.vmem [#allocation8], %s358
        %p360 = pneg %p193
        %p361 = pneg %p190
        %s362 = sand.u32 %s31, 1
        %s363 = scalar_lea.sflag [#allocation10], %s362
        %s364 = sand.u32 %s180, 1
        %s365 = smul.addr %s364, 16
        %s366 = scalar_lea.vmem [#allocation9], %s365
        %p367 = pneg %p219
        %p368 = pneg %p216
        %s369 = sand.u32 %s31, 1
        %s370 = scalar_lea.sflag [#allocation10], %s369
        %s371 = sand.u32 %s206, 1
        %s372 = smul.addr %s371, 16
        %s373 = scalar_lea.vmem [#allocation11], %s372
        %s374 = smul.u32 2, %s31
        %s375 = smul.u32 2, %s31
        %s376 = smul.u32 2, %s31
        %s377 = smul.u32 2, %s31
        %v378 = vld [vmem:[%s313] sm:$0xff]
        %v379 = vld [vmem:[%s313 + $0x8] sm:$0xff]
        %v380 = vld [vmem:[%s323] sm:$0xff]
        %v381 = vld [vmem:[%s323 + $0x8] sm:$0xff]
        %v382 = vld [vmem:[#allocation7] sm:$0xff]
        %v383 = vld [vmem:[#allocation7 + $0x8] sm:$0xff]
        %v384 = vld [vmem:[#allocation7 + $0x10] sm:$0xff]
        %v385 = vld [vmem:[#allocation7 + $0x18] sm:$0xff]
        %v386 = vld [vmem:[#allocation7 + $0x20] sm:$0xff]
        %v387 = vld [vmem:[#allocation7 + $0x28] sm:$0xff]
        %v388 = vld [vmem:[#allocation7 + $0x30] sm:$0xff]
        %v389 = vld [vmem:[#allocation7 + $0x38] sm:$0xff]
        %v390 = vld [vmem:[#allocation7 + $0x40] sm:$0xff]
        %v391 = vld [vmem:[#allocation7 + $0x48] sm:$0xff]
        %v392 = vld [vmem:[#allocation7 + $0x50] sm:$0xff]
        %v393 = vld [vmem:[#allocation7 + $0x58] sm:$0xff]
        %v394 = vld [vmem:[#allocation7 + $0x60] sm:$0xff]
        %v395 = vld [vmem:[#allocation7 + $0x68] sm:$0xff]
        %v396 = vld [vmem:[#allocation7 + $0x70] sm:$0xff]
        %v397 = vld [vmem:[#allocation7 + $0x78] sm:$0xff]
        %v398 = vld [vmem:[%s3] sm:$0x1]
        %v399 = vld [vmem:[%s4] sm:$0x1]
        %v401 = vperm.slane %v399, 0
        %403 = vmatpush.msra.mxu0 %v397
        %404 = vmatpush.msra.mxu0 %v396
        %405 = vmatpush.msra.mxu0 %v395
        %406 = vmatpush.msra.mxu0 %v394
        %407 = vmatpush.msra.mxu0 %v393
        %408 = vmatpush.msra.mxu0 %v392
        %409 = vmatpush.msra.mxu0 %v391
        %410 = vmatpush.msra.mxu0 %v390
        %411 = vmatpush.msra.mxu0 %v389
        %412 = vmatpush.msra.mxu0 %v388
        %413 = vmatpush.msra.mxu0 %v387
        %414 = vmatpush.msra.mxu0 %v386
        %415 = vmatpush.msra.mxu0 %v385
        %416 = vmatpush.msra.mxu0 %v384
        %417 = vmatpush.msra.mxu0 %v383
        %418 = vmatpush.msra.mxu0 %v382
        %419 = vmatmul.f32.gmra.mxu0 %v378
        %v420 = vpop.f32.mrf.mxu0
        %v421 = vadd.f32 %v401, %v420
        %422 = vmatmul.f32.gmra.mxu0 %v379
        %v423 = vpop.f32.mrf.mxu0
        %v424 = vadd.f32 %v401, %v423
        %425 = vdwg.mxu0
        %426 = vst [vmem:[%s373] sm:$0xff] %v421
        %427 = vst [vmem:[%s373 + $0x8] sm:$0xff] %v424
        %v429 = vperm.slane %v398, 0
        %431 = vmatpush.xpose.msra.mxu0 %v397
        %432 = vmatpush.xpose.msra.mxu0 %v396
        %433 = vmatpush.xpose.msra.mxu0 %v395
        %434 = vmatpush.xpose.msra.mxu0 %v394
        %435 = vmatpush.xpose.msra.mxu0 %v393
        %436 = vmatpush.xpose.msra.mxu0 %v392
        %437 = vmatpush.xpose.msra.mxu0 %v391
        %438 = vmatpush.xpose.msra.mxu0 %v390
        %439 = vmatpush.xpose.msra.mxu0 %v389
        %440 = vmatpush.xpose.msra.mxu0 %v388
        %441 = vmatpush.xpose.msra.mxu0 %v387
        %442 = vmatpush.xpose.msra.mxu0 %v386
        %443 = vmatpush.xpose.msra.mxu0 %v385
        %444 = vmatpush.xpose.msra.mxu0 %v384
        %445 = vmatpush.xpose.msra.mxu0 %v383
        %446 = vmatpush.xpose.msra.mxu0 %v382
        %447 = vmatmul.f32.gmra.mxu0 %v380
        %v448 = vpop.f32.mrf.mxu0
        %v449 = vadd.f32 %v429, %v448
        %450 = vmatmul.f32.gmra.mxu0 %v381
        %v451 = vpop.f32.mrf.mxu0
        %v452 = vadd.f32 %v429, %v451
        %453 = vdwg.mxu0
        %v454 = vsub.f32 %v449, %v378
        %v455 = vsub.f32 %v452, %v379
        %456 = vst [vmem:[%s366] sm:$0xff] %v454
        %457 = vst [vmem:[%s366 + $0x8] sm:$0xff] %v455
        %v458 = vmul.f32 %v380, %v421
        %v459 = vmul.f32 %v381, %v424
        %v460 = vmul.f32 %v378, 0.5
        %v461 = vmul.f32 %v379, 0.5
        %v462 = vsub.f32 %v429, %v460
        %v463 = vsub.f32 %v429, %v461
        %v464 = vmul.f32 %v378, %v462
        %v465 = vmul.f32 %v379, %v463
        %466 = vmatpush.xpose.msra.mxu0 0.0
        %467 = vmatpush.xpose.msra.mxu0 0.0
        %468 = vmatpush.xpose.msra.mxu0 0.0
        %469 = vmatpush.xpose.msra.mxu0 0.0
        %470 = vmatpush.xpose.msra.mxu0 0.0
        %471 = vmatpush.xpose.msra.mxu0 0.0
        %472 = vmatpush.xpose.msra.mxu0 0.0
        %473 = vmatpush.xpose.msra.mxu0 0.0
        %474 = vmatpush.xpose.msra.mxu0 0.0
        %475 = vmatpush.xpose.msra.mxu0 0.0
        %476 = vmatpush.xpose.msra.mxu0 0.0
        %477 = vmatpush.xpose.msra.mxu0 0.0
        %478 = vmatpush.xpose.msra.mxu0 0.0
        %479 = vmatpush.xpose.msra.mxu0 0.0
        %480 = vmatpush.xpose.msra.mxu0 %v465
        %481 = vmatpush.xpose.msra.mxu0 %v464
        %482 = vmatmul.f32.gmra.mxu0 1.0
        %v483 = vpop.f32.mrf.mxu0
        %v484 = vadd.f32 0.0, %v483
        %485 = vdwg.mxu0
        %486 = vmatpush.xpose.msra.mxu0 0.0
        %487 = vmatpush.xpose.msra.mxu0 0.0
        %488 = vmatpush.xpose.msra.mxu0 0.0
        %489 = vmatpush.xpose.msra.mxu0 0.0
        %490 = vmatpush.xpose.msra.mxu0 0.0
        %491 = vmatpush.xpose.msra.mxu0 0.0
        %492 = vmatpush.xpose.msra.mxu0 0.0
        %493 = vmatpush.xpose.msra.mxu0 0.0
        %494 = vmatpush.xpose.msra.mxu0 0.0
        %495 = vmatpush.xpose.msra.mxu0 0.0
        %496 = vmatpush.xpose.msra.mxu0 0.0
        %497 = vmatpush.xpose.msra.mxu0 0.0
        %498 = vmatpush.xpose.msra.mxu0 0.0
        %499 = vmatpush.xpose.msra.mxu0 0.0
        %500 = vmatpush.xpose.msra.mxu0 %v459
        %501 = vmatpush.xpose.msra.mxu0 %v458
        %502 = vmatmul.f32.gmra.mxu0 1.0
        %v503 = vpop.f32.mrf.mxu0
        %v504 = vadd.f32 %v484, %v503
        %505 = vdwg.mxu0
        %vm506 = vcmask 122880
        %507 = vst.msk [vmem:[%s359] sm:$0x1] %vm506, %v504
        %s508 = sand.u32 %s154, 1
        %s509 = scalar_lea.sflag [#allocation4], %s508
        %s510 = sand.u32 %s154, 1
        %s511 = scalar_lea.vmem [#allocation8], %s510
        %s512 = sand.u32 %s31, 1
        %s513 = scalar_lea.sflag [#allocation10], %s512
        %s514 = sand.u32 %s180, 1
        %s515 = smul.addr %s514, 16
        %s516 = scalar_lea.vmem [#allocation9], %s515
        %s517 = sand.u32 %s31, 1
        %s518 = scalar_lea.sflag [#allocation10], %s517
        %s519 = sand.u32 %s206, 1
        %s520 = smul.addr %s519, 16
        %s521 = scalar_lea.vmem [#allocation11], %s520
        // Predicated region
        $region53: #{tpu_custom_call.1} parent=39 // pred_check
          %p522 = pneg %p164
        $region54: #{tpu_custom_call.1} parent=39 // pred_check_branch
          %524 = sbr.rel (%p522) target = $region56
        $region55: #{tpu_custom_call.1} parent=39 // pred_region
          %526 = vsyncadd %s509, 0
          %s527 = scalar_lea.hbm %s5, %s31
          %s529 = sshll.u32 %s511, 4
          %s530 = int_to_ptr.vmem [resolvable:$true] %s529
          %s531 = sshll.u32 %s527, 4
          %s532 = int_to_ptr.hbm [resolvable:$true] %s531
          %534 = dma.vmem_to_hbm [thread:$0]  %s530, 16, %s532, %s509
        $region56: #{tpu_custom_call.1} parent=39 // pred_fallthru
          _
        // Predicated region
        $region57: #{tpu_custom_call.1} parent=39 // pred_check
          %p535 = pneg %p190
        $region58: #{tpu_custom_call.1} parent=39 // pred_check_branch
          %537 = sbr.rel (%p535) target = $region60
        $region59: #{tpu_custom_call.1} parent=39 // pred_region
          %s538 = smul.u32 2, %s31
          %540 = vsyncadd %s513, 0
          %s541 = smul.addr %s538, 8
          %s542 = scalar_lea.hbm %s6, %s541
          %s543 = sshll.u32 %s516, 4
          %s544 = int_to_ptr.vmem [resolvable:$true] %s543
          %s545 = sshll.u32 %s542, 4
          %s546 = int_to_ptr.hbm [resolvable:$true] %s545
          %551 = dma.vmem_to_hbm [thread:$0]  %s544, 256, %s546, %s513, 128, 128, 8
        $region60: #{tpu_custom_call.1} parent=39 // pred_fallthru
          _
        // Predicated region
        $region61: #{tpu_custom_call.1} parent=39 // pred_check
          %p552 = pneg %p216
        $region62: #{tpu_custom_call.1} parent=39 // pred_check_branch
          %554 = sbr.rel (%p552) target = $region64
        $region63: #{tpu_custom_call.1} parent=39 // pred_region
          %s555 = smul.u32 2, %s31
          %557 = vsyncadd %s518, 0
          %s558 = smul.addr %s555, 8
          %s559 = scalar_lea.hbm %s7, %s558
          %s560 = sshll.u32 %s521, 4
          %s561 = int_to_ptr.vmem [resolvable:$true] %s560
          %s562 = sshll.u32 %s559, 4
          %s563 = int_to_ptr.hbm [resolvable:$true] %s562
          %568 = dma.vmem_to_hbm [thread:$0]  %s561, 256, %s563, %s518, 128, 128, 8
        $region64: #{tpu_custom_call.1} parent=39 // pred_fallthru
          _
      $region40: #{tpu_custom_call.1} parent=5 // pred_fallthru
        _
      %p569 = scmp.le.s32.totalorder 2, %s26
      // Predicated region
      $region65: #{tpu_custom_call.1} parent=5 // pred_check
        %p570 = pneg %p569
      $region66: #{tpu_custom_call.1} parent=5 // pred_check_branch
        %572 = sbr.rel (%p570) target = $region68
      $region67: #{tpu_custom_call.1} parent=5 // pred_region
        %s573 = ssub.s32 %s26, 2
        // Predicated region
        $region69: #{tpu_custom_call.1} parent=67 // pred_check
          %p574 = pneg %p170
        $region70: #{tpu_custom_call.1} parent=67 // pred_check_branch
          %576 = sbr.rel (%p574) target = $region72
        $region71: #{tpu_custom_call.1} parent=67 // pred_region
          %s577 = sand.u32 %s155, 1
          %s578 = scalar_lea.sflag [#allocation4], %s577
          %s579 = sand.u32 %s155, 1
          %s580 = scalar_lea.vmem [#allocation8], %s579
          %582 = dma.done %s578, 16
        $region72: #{tpu_custom_call.1} parent=67 // pred_fallthru
          _
        // Predicated region
        $region73: #{tpu_custom_call.1} parent=67 // pred_check
          %p583 = pneg %p196
        $region74: #{tpu_custom_call.1} parent=67 // pred_check_branch
          %585 = sbr.rel (%p583) target = $region76
        $region75: #{tpu_custom_call.1} parent=67 // pred_region
          %s586 = sand.u32 %s32, 1
          %s587 = scalar_lea.sflag [#allocation10], %s586
          %s588 = sand.u32 %s181, 1
          %s589 = smul.addr %s588, 16
          %s590 = scalar_lea.vmem [#allocation9], %s589
          %592 = dma.done %s587, 256
        $region76: #{tpu_custom_call.1} parent=67 // pred_fallthru
          _
        // Predicated region
        $region77: #{tpu_custom_call.1} parent=67 // pred_check
          %p593 = pneg %p222
        $region78: #{tpu_custom_call.1} parent=67 // pred_check_branch
          %595 = sbr.rel (%p593) target = $region80
        $region79: #{tpu_custom_call.1} parent=67 // pred_region
          %s596 = sand.u32 %s32, 1
          %s597 = scalar_lea.sflag [#allocation10], %s596
          %s598 = sand.u32 %s207, 1
          %s599 = smul.addr %s598, 16
          %s600 = scalar_lea.vmem [#allocation11], %s599
          %602 = dma.done %s597, 256
        $region80: #{tpu_custom_call.1} parent=67 // pred_fallthru
          _
      $region68: #{tpu_custom_call.1} parent=5 // pred_fallthru
        _
    $region6: #{tpu_custom_call.1} parent=1 // loop_footer
      %s30 = sadd.s32 1, %s26
    $region7: #{tpu_custom_call.1} parent=1 // loop_footer_branch
      %25 = sbr.rel target = $region3
    $region8: #{tpu_custom_call.1} parent=1 // loop_exit
      _
    %603 = vsyncpa [#allocation3], 1
    %s604 = scalar_lea.sflag [#allocation3], 1
    %605 = vsyncpa %s604, 1
    %606 = vsyncpa [#allocation6], 1
    %s607 = scalar_lea.sflag [#allocation6], 1
    %608 = vsyncpa %s607, 1
    %609 = vsyncpa [#allocation4], 1
    %s610 = scalar_lea.sflag [#allocation4], 1
    %611 = vsyncpa %s610, 1
    %612 = vsyncpa [#allocation10], 1
    %s613 = scalar_lea.sflag [#allocation10], 1
    %614 = vsyncpa %s613, 1

</llo_original>
